<compile_context>
chip_gen: v7x
topology: tpu7x:2x2x1
jax: 0.10.0
libtpu: 0.0.40
codegen_flags: <defaults>
</compile_context>

<pallas_src>
import functools

import jax
import jax.numpy as jnp
from jax.experimental import pallas as pl
from jax.experimental.pallas import tpu as pltpu


# ----------------------------------------------------------------------------
# helpers
# ----------------------------------------------------------------------------
def _tile(dim, target, align):
    """Largest block <= target that divides dim and respects TPU alignment.

    If dim itself is <= target (or no aligned divisor exists) the full dim is
    used, which always satisfies the (8, 128) block constraint.
    """
    if dim <= target:
        return dim
    t = (target // align) * align
    while t >= align:
        if dim % t == 0:
            return t
        t -= align
    return dim


# ----------------------------------------------------------------------------
# Pallas kernels
# ----------------------------------------------------------------------------
def _make_matmul_bias_kernel(act: str):
    def kernel(x_ref, w_ref, b_ref, o_ref, acc_ref):
        @pl.when(pl.program_id(2) == 0)
        def _():
            acc_ref[...] = jnp.zeros_like(acc_ref)

        acc_ref[...] += jnp.dot(x_ref[...], w_ref[...],
                                preferred_element_type=jnp.float32)

        @pl.when(pl.program_id(2) == pl.num_programs(2) - 1)
        def _():
            y = acc_ref[...] + b_ref[...]
            if act == "gelu":
                y = jax.nn.gelu(y)
            elif act == "tanh":
                y = jnp.tanh(y)
            o_ref[...] = y.astype(o_ref.dtype)
    return kernel


def linear_pallas(x, w, b, act: str = "none", out_dtype=jnp.float32,
                  tm_target: int = 256, tn_target: int = 512,
                  tk_target: int = 512):
    """Tiled (M, K) @ (K, N) + (N,) with optional activation.

    bf16 MXU operands, f32 VMEM accumulator, reduction (K) axis last and
    'arbitrary', M/N axes 'parallel' for megacore sharding.
    """
    M, K = x.shape
    K2, N = w.shape
    assert K == K2
    tm = _tile(M, tm_target, 8)
    tn = _tile(N, tn_target, 128)
    tk = _tile(K, tk_target, 128)
    grid = (M // tm, N // tn, K // tk)

    bytes_accessed = (x.size * x.dtype.itemsize
                      + w.size * w.dtype.itemsize
                      + N * 4
                      + M * N * jnp.dtype(out_dtype).itemsize)
    cost = pl.CostEstimate(
        flops=2 * M * N * K,
        transcendentals=(M * N if act in ("gelu", "tanh") else 0),
        bytes_accessed=bytes_accessed)

    return pl.pallas_call(
        _make_matmul_bias_kernel(act),
        out_shape=jax.ShapeDtypeStruct((M, N), out_dtype),
        grid=grid,
        in_specs=[
            pl.BlockSpec((tm, tk), lambda i, j, k: (i, k)),
            pl.BlockSpec((tk, tn), lambda i, j, k: (k, j)),
            pl.BlockSpec((1, tn), lambda i, j, k: (0, j)),
        ],
        out_specs=pl.BlockSpec((tm, tn), lambda i, j, k: (i, j)),
        scratch_shapes=[pltpu.VMEM((tm, tn), jnp.float32)],
        compiler_params=pltpu.CompilerParams(
            dimension_semantics=("parallel", "parallel", "arbitrary")),
        cost_estimate=cost,
    )(x, w, b.reshape(1, N).astype(jnp.float32))


def _make_layernorm_kernel(fuse_residual: bool):
    def _ln(x, g, b):
        mu = jnp.mean(x, axis=-1, keepdims=True)
        var = jnp.mean(jnp.square(x - mu), axis=-1, keepdims=True)
        return (x - mu) * jax.lax.rsqrt(var + 1e-5) * g + b

    if fuse_residual:
        def kernel(x_ref, r_ref, g_ref, b_ref, o_ref):
            x = x_ref[...].astype(jnp.float32) + r_ref[...].astype(jnp.float32)
            o_ref[...] = _ln(x, g_ref[...], b_ref[...]).astype(o_ref.dtype)
        return kernel

    def kernel(x_ref, g_ref, b_ref, o_ref):
        x = x_ref[...].astype(jnp.float32)
        o_ref[...] = _ln(x, g_ref[...], b_ref[...]).astype(o_ref.dtype)
    return kernel


def layernorm_pallas(x, gamma, beta, residual=None, out_dtype=jnp.bfloat16,
                     tm_target: int = 512):
    """Row-tiled layernorm with an optionally fused residual add (f32 math)."""
    M, H = x.shape
    tm = _tile(M, tm_target, 8)
    grid = (M // tm,)

    args = [x]
    in_specs = [pl.BlockSpec((tm, H), lambda i: (i, 0))]
    if residual is not None:
        args.append(residual)
        in_specs.append(pl.BlockSpec((tm, H), lambda i: (i, 0)))
    args += [gamma.reshape(1, H).astype(jnp.float32),
             beta.reshape(1, H).astype(jnp.float32)]
    in_specs += [pl.BlockSpec((1, H), lambda i: (0, 0)),
                 pl.BlockSpec((1, H), lambda i: (0, 0))]

    return pl.pallas_call(
        _make_layernorm_kernel(residual is not None),
        out_shape=jax.ShapeDtypeStruct((M, H), out_dtype),
        grid=grid,
        in_specs=in_specs,
        out_specs=pl.BlockSpec((tm, H), lambda i: (i, 0)),
        compiler_params=pltpu.CompilerParams(dimension_semantics=("parallel",)),
    )(*args)


def _attention_kernel(qkv_ref, mb_ref, o_ref, *, n_heads, H, scale):
    """One batch row per grid step. qkv_ref: (L, 3H) bf16; mb_ref: (1, 1, L) f32."""
    dh = H // n_heads
    bias = mb_ref[0]                                   # (1, L) f32, 0 / -1e9
    outs = []
    for h in range(n_heads):
        q = qkv_ref[:, h * dh:(h + 1) * dh]            # (L, dh) bf16
        k = qkv_ref[:, H + h * dh:H + (h + 1) * dh]
        v = qkv_ref[:, 2 * H + h * dh:2 * H + (h + 1) * dh]
        # contract on dh directly: no explicit K transpose feeding the MXU
        s = jax.lax.dot_general(q, k, (((1,), (1,)), ((), ())),
                                preferred_element_type=jnp.float32) * scale
        s = s + bias                                   # broadcast over query rows
        s = s - jnp.max(s, axis=-1, keepdims=True)
        p = jnp.exp(s)
        inv = pl.reciprocal(jnp.sum(p, axis=-1, keepdims=True), approx=True)
        p = p * inv
        outs.append(jnp.dot(p.astype(v.dtype), v,
                            preferred_element_type=jnp.float32))
    # single lane-dense (L, H) store
    o_ref[...] = jnp.concatenate(outs, axis=-1).astype(o_ref.dtype)


def attention_pallas(qkv, mask_bias, n_heads, out_dtype=jnp.bfloat16):
    """qkv: (B*L, 3H) bf16 (fused Q|K|V); mask_bias: (B, 1, L) f32."""
    M, H3 = qkv.shape
    H = H3 // 3
    B = mask_bias.shape[0]
    L = M // B
    dh = H // n_heads
    scale = 1.0 / float(dh) ** 0.5

    return pl.pallas_call(
        functools.partial(_attention_kernel, n_heads=n_heads, H=H, scale=scale),
        out_shape=jax.ShapeDtypeStruct((M, H), out_dtype),
        grid=(B,),
        in_specs=[
            pl.BlockSpec((L, H3), lambda b: (b, 0)),
            pl.BlockSpec((1, 1, L), lambda b: (b, 0, 0)),
        ],
        out_specs=pl.BlockSpec((L, H), lambda b: (b, 0)),
        compiler_params=pltpu.CompilerParams(dimension_semantics=("parallel",)),
    )(qkv, mask_bias)


# ----------------------------------------------------------------------------
# RoBERTa-style encoder built on the kernels above
# ----------------------------------------------------------------------------
def transformer_layer(x, mask_bias, p, n_heads):
    """x: (B*L, H) bf16 residual stream; mask_bias: (B, 1, L) f32."""
    # fused QKV: one (H, 3H) matmul instead of three (H, H) ones
    qkv = linear_pallas(x, p["w_qkv"], p["b_qkv"], out_dtype=jnp.bfloat16)
    attn = attention_pallas(qkv, mask_bias, n_heads)               # (B*L, H) bf16
    attn_out = linear_pallas(attn, p["wo"], p["bo"], out_dtype=jnp.float32)
    h1 = layernorm_pallas(attn_out, p["ln1_g"], p["ln1_b"], residual=x)

    ff = linear_pallas(h1, p["w1"], p["b1"], act="gelu", out_dtype=jnp.bfloat16)
    ff_out = linear_pallas(ff, p["w2"], p["b2"], out_dtype=jnp.float32)
    h2 = layernorm_pallas(ff_out, p["ln2_g"], p["ln2_b"], residual=h1)
    return h2                                                       # (B*L, H) bf16


def roberta_forward(params, word, mask, pos1=None, pos2=None,
                    cat_entity_rep=False, n_heads=4):
    B, L = word.shape
    H = params["word_emb"].shape[1]

    # Embeddings (gather = glue) + LayerNorm kernel.
    h = (params["word_emb"][word]
         + params["pos_emb"][jnp.arange(L)][None, :, :]
         + params["type_emb"][0][None, None, :])
    h = layernorm_pallas(h.reshape(B * L, H),
                         params["emb_ln_g"], params["emb_ln_b"])    # bf16 (B*L, H)

    # additive mask bias, kept in f32 (applied to f32 scores inside the kernel)
    mask_bias = ((1.0 - mask.astype(jnp.float32)) * -1e9).reshape(B, 1, L)

    for layer_params in params["layers"]:
        h = transformer_layer(h, mask_bias, layer_params, n_heads)

    if not cat_entity_rep:
        # pooler: tanh(W @ h[:, 0] + b)  ==  the `x` returned by RobertaEntModel
        cls = h.reshape(B, L, H)[:, 0, :]                           # (B, H) bf16
        pooled = linear_pallas(cls, params["pool_w"], params["pool_b"],
                               act="tanh", out_dtype=jnp.float32)
        return pooled
    else:
        hb = h.reshape(B, L, H).astype(jnp.float32)
        rng = jnp.arange(B)
        h_state = hb[rng, pos1]                                     # (B, H)
        t_state = hb[rng, pos2]                                     # (B, H)
        return jnp.concatenate((h_state, t_state), axis=-1)         # (B, 2H)


# ----------------------------------------------------------------------------
# Deterministic parameter init (weights stored bf16 for MXU, norms/bias f32)
# ----------------------------------------------------------------------------
def init_params(key, vocab, max_pos, H, inter, n_layers):
    def nrm(k, shape, dtype=jnp.float32):
        return (0.02 * jax.random.normal(k, shape, dtype=jnp.float32)).astype(dtype)

    keys = jax.random.split(key, 4 + n_layers)
    params = {
        "word_emb": nrm(keys[0], (vocab, H)),
        "pos_emb": nrm(keys[1], (max_pos, H)),
        "type_emb": nrm(keys[2], (2, H)),
        "emb_ln_g": jnp.ones((H,), jnp.float32),
        "emb_ln_b": jnp.zeros((H,), jnp.float32),
        "layers": [],
    }
    for li in range(n_layers):
        lk = jax.random.split(keys[4 + li], 6)
        wq, wk, wv = nrm(lk[0], (H, H)), nrm(lk[1], (H, H)), nrm(lk[2], (H, H))
        params["layers"].append({
            "w_qkv": jnp.concatenate([wq, wk, wv], axis=1).astype(jnp.bfloat16),
            "b_qkv": jnp.zeros((3 * H,), jnp.float32),
            "wo": nrm(lk[3], (H, H), jnp.bfloat16),
            "bo": jnp.zeros((H,), jnp.float32),
            "ln1_g": jnp.ones((H,), jnp.float32),
            "ln1_b": jnp.zeros((H,), jnp.float32),
            "w1": nrm(lk[4], (H, inter), jnp.bfloat16),
            "b1": jnp.zeros((inter,), jnp.float32),
            "w2": nrm(lk[5], (inter, H), jnp.bfloat16),
            "b2": jnp.zeros((H,), jnp.float32),
            "ln2_g": jnp.ones((H,), jnp.float32),
            "ln2_b": jnp.zeros((H,), jnp.float32),
        })
    params["pool_w"] = nrm(keys[3], (H, H), jnp.bfloat16)
    params["pool_b"] = jnp.zeros((H,), jnp.float32)
    return params


if __name__ == "__main__":
    B, L, H, n_heads, inter = 2, 8, 32, 4, 64
    vocab, max_pos, n_layers = 64, 16, 2

    key = jax.random.PRNGKey(0)
    kp, kw, kpos = jax.random.split(key, 3)
    params = init_params(kp, vocab, max_pos, H, inter, n_layers)

    word = jax.random.randint(kw, (B, L), 0, vocab, dtype=jnp.int32)
    mask = jnp.array([[1, 1, 1, 1, 1, 1, 1, 1],
                      [1, 1, 1, 1, 1, 1, 0, 0]], dtype=jnp.float32)
    pos1 = jnp.array([1, 2], dtype=jnp.int32)
    pos2 = jnp.array([3, 5], dtype=jnp.int32)

    fwd = jax.jit(roberta_forward, static_argnames=("cat_entity_rep", "n_heads"))

    # Branch 1: cat_entity_rep=False -> pooled output `x`  (B, H)
    pooled = fwd(params, word, mask, cat_entity_rep=False, n_heads=n_heads)
    # Branch 2: cat_entity_rep=True -> concat of entity hidden states (B, 2H)
    state = fwd(params, word, mask, pos1, pos2,
                cat_entity_rep=True, n_heads=n_heads)

    pooled, state = jax.block_until_ready((pooled, state))
    assert pooled.shape == (B, H) and pooled.dtype == jnp.float32
    assert state.shape == (B, 2 * H) and state.dtype == jnp.float32
    assert bool(jnp.all(jnp.isfinite(pooled))) and bool(jnp.all(jnp.isfinite(state)))
    print("KERNEL_OK")
</pallas_src>

<mosaic_0001>
module attributes {stable_mosaic.version = 11 : i64} {
  func.func @kernel(%arg0: i32, %arg1: i32, %arg2: i32, %arg3: memref<16x32xbf16, #tpu.memory_space<vmem>>, %arg4: memref<32x96xbf16, #tpu.memory_space<vmem>>, %arg5: memref<1x96xf32, #tpu.memory_space<vmem>>, %arg6: memref<16x96xbf16, #tpu.memory_space<vmem>>, %arg7: memref<16x96xf32, #tpu.memory_space<vmem>>) attributes {dimension_semantics = [#tpu.dimension_semantics<parallel>, #tpu.dimension_semantics<parallel>, #tpu.dimension_semantics<arbitrary>], iteration_bounds = array<i64: 1, 1, 1>, scalar_prefetch = 0 : i64, scratch_operands = 1 : i64, tpu.core_type = #tpu.core_type<tc>, window_params = [{transform_indices = @transform_0, window_bounds = array<i64: 16, 32>}, {transform_indices = @transform_1, window_bounds = array<i64: 32, 96>}, {transform_indices = @transform_2, window_bounds = array<i64: 1, 96>}, {transform_indices = @transform_3, window_bounds = array<i64: 16, 96>}]} {
    %c0_i32 = arith.constant 0 : i32
    %0 = arith.cmpi eq, %arg2, %c0_i32 : i32
    %1 = arith.extui %0 : i1 to i32
    %c0_i32_0 = arith.constant 0 : i32
    %2 = arith.cmpi ne, %1, %c0_i32_0 : i32
    scf.if %2 {
      %cst_10 = arith.constant 0.000000e+00 : f32
      %12 = vector.broadcast %cst_10 : f32 to vector<16x96xf32>
      %c0_11 = arith.constant 0 : index
      %c0_12 = arith.constant 0 : index
      %13 = vector.load %arg7[%c0_11, %c0_12] : memref<16x96xf32, #tpu.memory_space<vmem>>, vector<16x96xf32>
      tpu.vector_store %arg7[%c0_11, %c0_12], %12 {strides = array<i32>} : memref<16x96xf32, #tpu.memory_space<vmem>>, vector<16x96xf32>,
    } else {
    }
    %c0 = arith.constant 0 : index
    %c0_1 = arith.constant 0 : index
    %3 = vector.load %arg7[%c0, %c0_1] : memref<16x96xf32, #tpu.memory_space<vmem>>, vector<16x96xf32>
    %c0_2 = arith.constant 0 : index
    %c0_3 = arith.constant 0 : index
    %4 = vector.load %arg3[%c0_2, %c0_3] : memref<16x32xbf16, #tpu.memory_space<vmem>>, vector<16x32xbf16>
    %c0_4 = arith.constant 0 : index
    %c0_5 = arith.constant 0 : index
    %5 = vector.load %arg4[%c0_4, %c0_5] : memref<32x96xbf16, #tpu.memory_space<vmem>>, vector<32x96xbf16>
    %cst = arith.constant dense<0.000000e+00> : vector<16x96xf32>
    %6 = tpu.matmul %4, %5, %cst {dimension_numbers = #tpu.dot_dimension_numbers<[1], [0], [0], [1], [0, 0, 1, 1], [], []>} : vector<16x32xbf16>, vector<32x96xbf16>, vector<16x96xf32> -> vector<16x96xf32>
    %7 = arith.addf %3, %6 : vector<16x96xf32>
    %c0_6 = arith.constant 0 : index
    %c0_7 = arith.constant 0 : index
    %8 = vector.load %arg7[%c0_6, %c0_7] : memref<16x96xf32, #tpu.memory_space<vmem>>, vector<16x96xf32>
    tpu.vector_store %arg7[%c0_6, %c0_7], %7 {strides = array<i32>} : memref<16x96xf32, #tpu.memory_space<vmem>>, vector<16x96xf32>,
    %c0_i32_8 = arith.constant 0 : i32
    %9 = arith.cmpi eq, %arg2, %c0_i32_8 : i32
    %10 = arith.extui %9 : i1 to i32
    %c0_i32_9 = arith.constant 0 : i32
    %11 = arith.cmpi ne, %10, %c0_i32_9 : i32
    scf.if %11 {
      %c0_10 = arith.constant 0 : index
      %c0_11 = arith.constant 0 : index
      %12 = vector.load %arg7[%c0_10, %c0_11] : memref<16x96xf32, #tpu.memory_space<vmem>>, vector<16x96xf32>
      %c0_12 = arith.constant 0 : index
      %c0_13 = arith.constant 0 : index
      %13 = vector.load %arg5[%c0_12, %c0_13] : memref<1x96xf32, #tpu.memory_space<vmem>>, vector<1x96xf32>
      %14 = vector.broadcast %13 : vector<1x96xf32> to vector<16x96xf32>
      %15 = arith.addf %12, %14 : vector<16x96xf32>
      %16 = arith.truncf %15 : vector<16x96xf32> to vector<16x96xbf16>
      %c0_14 = arith.constant 0 : index
      %c0_15 = arith.constant 0 : index
      %17 = vector.load %arg6[%c0_14, %c0_15] : memref<16x96xbf16, #tpu.memory_space<vmem>>, vector<16x96xbf16>
      tpu.vector_store %arg6[%c0_14, %c0_15], %16 {strides = array<i32>} : memref<16x96xbf16, #tpu.memory_space<vmem>>, vector<16x96xbf16>,
    } else {
    }
    return
  }
  func.func @transform_0(%arg0: i32, %arg1: i32, %arg2: i32) -> (i32, i32) {
    %c0_i32 = arith.constant 0 : i32
    return %arg0, %arg2 : i32, i32
  }
  func.func @transform_1(%arg0: i32, %arg1: i32, %arg2: i32) -> (i32, i32) {
    %c0_i32 = arith.constant 0 : i32
    return %arg2, %arg1 : i32, i32
  }
  func.func @transform_2(%arg0: i32, %arg1: i32, %arg2: i32) -> (i32, i32) {
    %c0_i32 = arith.constant 0 : i32
    %c0_i32_0 = arith.constant 0 : i32
    return %c0_i32, %arg1 : i32, i32
  }
  func.func @transform_3(%arg0: i32, %arg1: i32, %arg2: i32) -> (i32, i32) {
    %c0_i32 = arith.constant 0 : i32
    return %arg0, %arg1 : i32, i32
  }
}

module attributes {stable_mosaic.version = 11 : i64} {
  func.func @kernel(%arg0: i32, %arg1: memref<16x32xf32, #tpu.memory_space<vmem>>, %arg2: memref<1x32xf32, #tpu.memory_space<vmem>>, %arg3: memref<1x32xf32, #tpu.memory_space<vmem>>, %arg4: memref<16x32xbf16, #tpu.memory_space<vmem>>) attributes {dimension_semantics = [#tpu.dimension_semantics<parallel>], iteration_bounds = array<i64: 1>, scalar_prefetch = 0 : i64, scratch_operands = 0 : i64, tpu.core_type = #tpu.core_type<tc>, window_params = [{transform_indices = @transform_0, window_bounds = array<i64: 16, 32>}, {pipeline_mode = #tpu.pipeline_mode<synchronous>, transform_indices = @transform_1, window_bounds = array<i64: 1, 32>}, {pipeline_mode = #tpu.pipeline_mode<synchronous>, transform_indices = @transform_2, window_bounds = array<i64: 1, 32>}, {transform_indices = @transform_3, window_bounds = array<i64: 16, 32>}]} {
    %c0 = arith.constant 0 : index
    %c0_0 = arith.constant 0 : index
    %0 = vector.load %arg1[%c0, %c0_0] : memref<16x32xf32, #tpu.memory_space<vmem>>, vector<16x32xf32>
    %c0_1 = arith.constant 0 : index
    %c0_2 = arith.constant 0 : index
    %1 = vector.load %arg2[%c0_1, %c0_2] : memref<1x32xf32, #tpu.memory_space<vmem>>, vector<1x32xf32>
    %c0_3 = arith.constant 0 : index
    %c0_4 = arith.constant 0 : index
    %2 = vector.load %arg3[%c0_3, %c0_4] : memref<1x32xf32, #tpu.memory_space<vmem>>, vector<1x32xf32>
    %cst = arith.constant dense<0.000000e+00> : vector<16xf32>
    %3 = vector.multi_reduction <add>, %0, %cst [1] : vector<16x32xf32> to vector<16xf32>
    %4 = vector.shape_cast %3 : vector<16xf32> to vector<16x1xf32>
    %cst_5 = arith.constant 3.200000e+01 : f32
    %5 = vector.broadcast %cst_5 : f32 to vector<16x1xf32>
    %6 = arith.divf %4, %5 : vector<16x1xf32>
    %7 = vector.broadcast %6 : vector<16x1xf32> to vector<16x32xf32>
    %8 = arith.subf %0, %7 : vector<16x32xf32>
    %9 = arith.mulf %8, %8 : vector<16x32xf32>
    %cst_6 = arith.constant dense<0.000000e+00> : vector<16xf32>
    %10 = vector.multi_reduction <add>, %9, %cst_6 [1] : vector<16x32xf32> to vector<16xf32>
    %11 = vector.shape_cast %10 : vector<16xf32> to vector<16x1xf32>
    %cst_7 = arith.constant 3.200000e+01 : f32
    %12 = vector.broadcast %cst_7 : f32 to vector<16x1xf32>
    %13 = arith.divf %11, %12 : vector<16x1xf32>
    %14 = vector.broadcast %6 : vector<16x1xf32> to vector<16x32xf32>
    %15 = arith.subf %0, %14 : vector<16x32xf32>
    %cst_8 = arith.constant 9.99999974E-6 : f32
    %16 = vector.broadcast %cst_8 : f32 to vector<16x1xf32>
    %17 = arith.addf %13, %16 : vector<16x1xf32>
    %18 = math.rsqrt %17 : vector<16x1xf32>
    %19 = vector.broadcast %18 : vector<16x1xf32> to vector<16x32xf32>
    %20 = arith.mulf %15, %19 : vector<16x32xf32>
    %21 = vector.broadcast %1 : vector<1x32xf32> to vector<16x32xf32>
    %22 = arith.mulf %20, %21 : vector<16x32xf32>
    %23 = vector.broadcast %2 : vector<1x32xf32> to vector<16x32xf32>
    %24 = arith.addf %22, %23 : vector<16x32xf32>
    %25 = arith.truncf %24 : vector<16x32xf32> to vector<16x32xbf16>
    %c0_9 = arith.constant 0 : index
    %c0_10 = arith.constant 0 : index
    %26 = vector.load %arg4[%c0_9, %c0_10] : memref<16x32xbf16, #tpu.memory_space<vmem>>, vector<16x32xbf16>
    tpu.vector_store %arg4[%c0_9, %c0_10], %25 {strides = array<i32>} : memref<16x32xbf16, #tpu.memory_space<vmem>>, vector<16x32xbf16>,
    return
  }
  func.func @transform_0(%arg0: i32) -> (i32, i32) {
    %c0_i32 = arith.constant 0 : i32
    %c0_i32_0 = arith.constant 0 : i32
    return %arg0, %c0_i32 : i32, i32
  }
  func.func @transform_1(%arg0: i32) -> (i32, i32) {
    %c0_i32 = arith.constant 0 : i32
    %c0_i32_0 = arith.constant 0 : i32
    %c0_i32_1 = arith.constant 0 : i32
    return %c0_i32, %c0_i32_0 : i32, i32
  }
  func.func @transform_2(%arg0: i32) -> (i32, i32) {
    %c0_i32 = arith.constant 0 : i32
    %c0_i32_0 = arith.constant 0 : i32
    %c0_i32_1 = arith.constant 0 : i32
    return %c0_i32, %c0_i32_0 : i32, i32
  }
  func.func @transform_3(%arg0: i32) -> (i32, i32) {
    %c0_i32 = arith.constant 0 : i32
    %c0_i32_0 = arith.constant 0 : i32
    return %arg0, %c0_i32 : i32, i32
  }
}

module attributes {stable_mosaic.version = 11 : i64} {
  func.func @kernel(%arg0: i32, %arg1: i32, %arg2: i32, %arg3: memref<16x32xbf16, #tpu.memory_space<vmem>>, %arg4: memref<32x32xbf16, #tpu.memory_space<vmem>>, %arg5: memref<1x32xf32, #tpu.memory_space<vmem>>, %arg6: memref<16x32xf32, #tpu.memory_space<vmem>>, %arg7: memref<16x32xf32, #tpu.memory_space<vmem>>) attributes {dimension_semantics = [#tpu.dimension_semantics<parallel>, #tpu.dimension_semantics<parallel>, #tpu.dimension_semantics<arbitrary>], iteration_bounds = array<i64: 1, 1, 1>, scalar_prefetch = 0 : i64, scratch_operands = 1 : i64, tpu.core_type = #tpu.core_type<tc>, window_params = [{transform_indices = @transform_0, window_bounds = array<i64: 16, 32>}, {transform_indices = @transform_1, window_bounds = array<i64: 32, 32>}, {transform_indices = @transform_2, window_bounds = array<i64: 1, 32>}, {transform_indices = @transform_3, window_bounds = array<i64: 16, 32>}]} {
    %c0_i32 = arith.constant 0 : i32
    %0 = arith.cmpi eq, %arg2, %c0_i32 : i32
    %1 = arith.extui %0 : i1 to i32
    %c0_i32_0 = arith.constant 0 : i32
    %2 = arith.cmpi ne, %1, %c0_i32_0 : i32
    scf.if %2 {
      %cst_10 = arith.constant 0.000000e+00 : f32
      %12 = vector.broadcast %cst_10 : f32 to vector<16x32xf32>
      %c0_11 = arith.constant 0 : index
      %c0_12 = arith.constant 0 : index
      %13 = vector.load %arg7[%c0_11, %c0_12] : memref<16x32xf32, #tpu.memory_space<vmem>>, vector<16x32xf32>
      tpu.vector_store %arg7[%c0_11, %c0_12], %12 {strides = array<i32>} : memref<16x32xf32, #tpu.memory_space<vmem>>, vector<16x32xf32>,
    } else {
    }
    %c0 = arith.constant 0 : index
    %c0_1 = arith.constant 0 : index
    %3 = vector.load %arg7[%c0, %c0_1] : memref<16x32xf32, #tpu.memory_space<vmem>>, vector<16x32xf32>
    %c0_2 = arith.constant 0 : index
    %c0_3 = arith.constant 0 : index
    %4 = vector.load %arg3[%c0_2, %c0_3] : memref<16x32xbf16, #tpu.memory_space<vmem>>, vector<16x32xbf16>
    %c0_4 = arith.constant 0 : index
    %c0_5 = arith.constant 0 : index
    %5 = vector.load %arg4[%c0_4, %c0_5] : memref<32x32xbf16, #tpu.memory_space<vmem>>, vector<32x32xbf16>
    %cst = arith.constant dense<0.000000e+00> : vector<16x32xf32>
    %6 = tpu.matmul %4, %5, %cst {dimension_numbers = #tpu.dot_dimension_numbers<[1], [0], [0], [1], [0, 0, 1, 1], [], []>} : vector<16x32xbf16>, vector<32x32xbf16>, vector<16x32xf32> -> vector<16x32xf32>
    %7 = arith.addf %3, %6 : vector<16x32xf32>
    %c0_6 = arith.constant 0 : index
    %c0_7 = arith.constant 0 : index
    %8 = vector.load %arg7[%c0_6, %c0_7] : memref<16x32xf32, #tpu.memory_space<vmem>>, vector<16x32xf32>
    tpu.vector_store %arg7[%c0_6, %c0_7], %7 {strides = array<i32>} : memref<16x32xf32, #tpu.memory_space<vmem>>, vector<16x32xf32>,
    %c0_i32_8 = arith.constant 0 : i32
    %9 = arith.cmpi eq, %arg2, %c0_i32_8 : i32
    %10 = arith.extui %9 : i1 to i32
    %c0_i32_9 = arith.constant 0 : i32
    %11 = arith.cmpi ne, %10, %c0_i32_9 : i32
    scf.if %11 {
      %c0_10 = arith.constant 0 : index
      %c0_11 = arith.constant 0 : index
      %12 = vector.load %arg7[%c0_10, %c0_11] : memref<16x32xf32, #tpu.memory_space<vmem>>, vector<16x32xf32>
      %c0_12 = arith.constant 0 : index
      %c0_13 = arith.constant 0 : index
      %13 = vector.load %arg5[%c0_12, %c0_13] : memref<1x32xf32, #tpu.memory_space<vmem>>, vector<1x32xf32>
      %14 = vector.broadcast %13 : vector<1x32xf32> to vector<16x32xf32>
      %15 = arith.addf %12, %14 : vector<16x32xf32>
      %c0_14 = arith.constant 0 : index
      %c0_15 = arith.constant 0 : index
      %16 = vector.load %arg6[%c0_14, %c0_15] : memref<16x32xf32, #tpu.memory_space<vmem>>, vector<16x32xf32>
      tpu.vector_store %arg6[%c0_14, %c0_15], %15 {strides = array<i32>} : memref<16x32xf32, #tpu.memory_space<vmem>>, vector<16x32xf32>,
    } else {
    }
    return
  }
  func.func @transform_0(%arg0: i32, %arg1: i32, %arg2: i32) -> (i32, i32) {
    %c0_i32 = arith.constant 0 : i32
    return %arg0, %arg2 : i32, i32
  }
  func.func @transform_1(%arg0: i32, %arg1: i32, %arg2: i32) -> (i32, i32) {
    %c0_i32 = arith.constant 0 : i32
    return %arg2, %arg1 : i32, i32
  }
  func.func @transform_2(%arg0: i32, %arg1: i32, %arg2: i32) -> (i32, i32) {
    %c0_i32 = arith.constant 0 : i32
    %c0_i32_0 = arith.constant 0 : i32
    return %c0_i32, %arg1 : i32, i32
  }
  func.func @transform_3(%arg0: i32, %arg1: i32, %arg2: i32) -> (i32, i32) {
    %c0_i32 = arith.constant 0 : i32
    return %arg0, %arg1 : i32, i32
  }
}

module attributes {stable_mosaic.version = 11 : i64} {
  func.func @_attention_kernel(%arg0: i32, %arg1: memref<8x96xbf16, #tpu.memory_space<vmem>>, %arg2: memref<1x1x8xf32, #tpu.memory_space<vmem>>, %arg3: memref<8x32xbf16, #tpu.memory_space<vmem>>) attributes {dimension_semantics = [#tpu.dimension_semantics<parallel>], iteration_bounds = array<i64: 2>, scalar_prefetch = 0 : i64, scratch_operands = 0 : i64, tpu.core_type = #tpu.core_type<tc>, window_params = [{transform_indices = @transform_0, window_bounds = array<i64: 8, 96>}, {transform_indices = @transform_1, window_bounds = array<i64: 1, 1, 8>}, {transform_indices = @transform_2, window_bounds = array<i64: 8, 32>}]} {
    %c0 = arith.constant 0 : index
    %c0_0 = arith.constant 0 : index
    %c0_1 = arith.constant 0 : index
    %0 = vector.load %arg2[%c0, %c0_0, %c0_1] : memref<1x1x8xf32, #tpu.memory_space<vmem>>, vector<1x1x8xf32>
    %1 = vector.shape_cast %0 : vector<1x1x8xf32> to vector<1x8xf32>
    %c0_2 = arith.constant 0 : index
    %c0_3 = arith.constant 0 : index
    %2 = vector.load %arg1[%c0_2, %c0_3] : memref<8x96xbf16, #tpu.memory_space<vmem>>, vector<8x8xbf16>
    %c0_4 = arith.constant 0 : index
    %c32 = arith.constant 32 : index
    %3 = vector.load %arg1[%c0_4, %c32] : memref<8x96xbf16, #tpu.memory_space<vmem>>, vector<8x8xbf16>
    %c0_5 = arith.constant 0 : index
    %c64 = arith.constant 64 : index
    %4 = vector.load %arg1[%c0_5, %c64] : memref<8x96xbf16, #tpu.memory_space<vmem>>, vector<8x8xbf16>
    %cst = arith.constant dense<0.000000e+00> : vector<8x8xf32>
    %5 = tpu.matmul %2, %3, %cst {dimension_numbers = #tpu.dot_dimension_numbers<[1], [1], [0], [0], [0, 0, 1, 0], [], []>} : vector<8x8xbf16>, vector<8x8xbf16>, vector<8x8xf32> -> vector<8x8xf32>
    %cst_6 = arith.constant 0.353553385 : f32
    %6 = vector.broadcast %cst_6 : f32 to vector<8x8xf32>
    %7 = arith.mulf %5, %6 : vector<8x8xf32>
    %8 = vector.broadcast %1 : vector<1x8xf32> to vector<8x8xf32>
    %9 = arith.addf %7, %8 : vector<8x8xf32>
    %cst_7 = arith.constant dense<0xFF800000> : vector<8xf32>
    %10 = vector.multi_reduction <maximumf>, %9, %cst_7 [1] : vector<8x8xf32> to vector<8xf32>
    %11 = vector.shape_cast %10 : vector<8xf32> to vector<8x1xf32>
    %12 = vector.broadcast %11 : vector<8x1xf32> to vector<8x8xf32>
    %13 = arith.subf %9, %12 : vector<8x8xf32>
    %14 = math.exp %13 : vector<8x8xf32>
    %cst_8 = arith.constant dense<0.000000e+00> : vector<8xf32>
    %15 = vector.multi_reduction <add>, %14, %cst_8 [1] : vector<8x8xf32> to vector<8xf32>
    %16 = vector.shape_cast %15 : vector<8xf32> to vector<8x1xf32>
    %17 = tpu.reciprocal %16 {approx = true} : vector<8x1xf32> -> vector<8x1xf32>
    %18 = vector.broadcast %17 : vector<8x1xf32> to vector<8x8xf32>
    %19 = arith.mulf %14, %18 : vector<8x8xf32>
    %20 = arith.truncf %19 : vector<8x8xf32> to vector<8x8xbf16>
    %cst_9 = arith.constant dense<0.000000e+00> : vector<8x8xf32>
    %21 = tpu.matmul %20, %4, %cst_9 {dimension_numbers = #tpu.dot_dimension_numbers<[1], [0], [0], [1], [0, 0, 1, 1], [], []>} : vector<8x8xbf16>, vector<8x8xbf16>, vector<8x8xf32> -> vector<8x8xf32>
    %c0_10 = arith.constant 0 : index
    %c8 = arith.constant 8 : index
    %22 = vector.load %arg1[%c0_10, %c8] : memref<8x96xbf16, #tpu.memory_space<vmem>>, vector<8x8xbf16>
    %c0_11 = arith.constant 0 : index
    %c40 = arith.constant 40 : index
    %23 = vector.load %arg1[%c0_11, %c40] : memref<8x96xbf16, #tpu.memory_space<vmem>>, vector<8x8xbf16>
    %c0_12 = arith.constant 0 : index
    %c72 = arith.constant 72 : index
    %24 = vector.load %arg1[%c0_12, %c72] : memref<8x96xbf16, #tpu.memory_space<vmem>>, vector<8x8xbf16>
    %cst_13 = arith.constant dense<0.000000e+00> : vector<8x8xf32>
    %25 = tpu.matmul %22, %23, %cst_13 {dimension_numbers = #tpu.dot_dimension_numbers<[1], [1], [0], [0], [0, 0, 1, 0], [], []>} : vector<8x8xbf16>, vector<8x8xbf16>, vector<8x8xf32> -> vector<8x8xf32>
    %cst_14 = arith.constant 0.353553385 : f32
    %26 = vector.broadcast %cst_14 : f32 to vector<8x8xf32>
    %27 = arith.mulf %25, %26 : vector<8x8xf32>
    %28 = vector.broadcast %1 : vector<1x8xf32> to vector<8x8xf32>
    %29 = arith.addf %27, %28 : vector<8x8xf32>
    %cst_15 = arith.constant dense<0xFF800000> : vector<8xf32>
    %30 = vector.multi_reduction <maximumf>, %29, %cst_15 [1] : vector<8x8xf32> to vector<8xf32>
    %31 = vector.shape_cast %30 : vector<8xf32> to vector<8x1xf32>
    %32 = vector.broadcast %31 : vector<8x1xf32> to vector<8x8xf32>
    %33 = arith.subf %29, %32 : vector<8x8xf32>
    %34 = math.exp %33 : vector<8x8xf32>
    %cst_16 = arith.constant dense<0.000000e+00> : vector<8xf32>
    %35 = vector.multi_reduction <add>, %34, %cst_16 [1] : vector<8x8xf32> to vector<8xf32>
    %36 = vector.shape_cast %35 : vector<8xf32> to vector<8x1xf32>
    %37 = tpu.reciprocal %36 {approx = true} : vector<8x1xf32> -> vector<8x1xf32>
    %38 = vector.broadcast %37 : vector<8x1xf32> to vector<8x8xf32>
    %39 = arith.mulf %34, %38 : vector<8x8xf32>
    %40 = arith.truncf %39 : vector<8x8xf32> to vector<8x8xbf16>
    %cst_17 = arith.constant dense<0.000000e+00> : vector<8x8xf32>
    %41 = tpu.matmul %40, %24, %cst_17 {dimension_numbers = #tpu.dot_dimension_numbers<[1], [0], [0], [1], [0, 0, 1, 1], [], []>} : vector<8x8xbf16>, vector<8x8xbf16>, vector<8x8xf32> -> vector<8x8xf32>
    %c0_18 = arith.constant 0 : index
    %c16 = arith.constant 16 : index
    %42 = vector.load %arg1[%c0_18, %c16] : memref<8x96xbf16, #tpu.memory_space<vmem>>, vector<8x8xbf16>
    %c0_19 = arith.constant 0 : index
    %c48 = arith.constant 48 : index
    %43 = vector.load %arg1[%c0_19, %c48] : memref<8x96xbf16, #tpu.memory_space<vmem>>, vector<8x8xbf16>
    %c0_20 = arith.constant 0 : index
    %c80 = arith.constant 80 : index
    %44 = vector.load %arg1[%c0_20, %c80] : memref<8x96xbf16, #tpu.memory_space<vmem>>, vector<8x8xbf16>
    %cst_21 = arith.constant dense<0.000000e+00> : vector<8x8xf32>
    %45 = tpu.matmul %42, %43, %cst_21 {dimension_numbers = #tpu.dot_dimension_numbers<[1], [1], [0], [0], [0, 0, 1, 0], [], []>} : vector<8x8xbf16>, vector<8x8xbf16>, vector<8x8xf32> -> vector<8x8xf32>
    %cst_22 = arith.constant 0.353553385 : f32
    %46 = vector.broadcast %cst_22 : f32 to vector<8x8xf32>
    %47 = arith.mulf %45, %46 : vector<8x8xf32>
    %48 = vector.broadcast %1 : vector<1x8xf32> to vector<8x8xf32>
    %49 = arith.addf %47, %48 : vector<8x8xf32>
    %cst_23 = arith.constant dense<0xFF800000> : vector<8xf32>
    %50 = vector.multi_reduction <maximumf>, %49, %cst_23 [1] : vector<8x8xf32> to vector<8xf32>
    %51 = vector.shape_cast %50 : vector<8xf32> to vector<8x1xf32>
    %52 = vector.broadcast %51 : vector<8x1xf32> to vector<8x8xf32>
    %53 = arith.subf %49, %52 : vector<8x8xf32>
    %54 = math.exp %53 : vector<8x8xf32>
    %cst_24 = arith.constant dense<0.000000e+00> : vector<8xf32>
    %55 = vector.multi_reduction <add>, %54, %cst_24 [1] : vector<8x8xf32> to vector<8xf32>
    %56 = vector.shape_cast %55 : vector<8xf32> to vector<8x1xf32>
    %57 = tpu.reciprocal %56 {approx = true} : vector<8x1xf32> -> vector<8x1xf32>
    %58 = vector.broadcast %57 : vector<8x1xf32> to vector<8x8xf32>
    %59 = arith.mulf %54, %58 : vector<8x8xf32>
    %60 = arith.truncf %59 : vector<8x8xf32> to vector<8x8xbf16>
    %cst_25 = arith.constant dense<0.000000e+00> : vector<8x8xf32>
    %61 = tpu.matmul %60, %44, %cst_25 {dimension_numbers = #tpu.dot_dimension_numbers<[1], [0], [0], [1], [0, 0, 1, 1], [], []>} : vector<8x8xbf16>, vector<8x8xbf16>, vector<8x8xf32> -> vector<8x8xf32>
    %c0_26 = arith.constant 0 : index
    %c24 = arith.constant 24 : index
    %62 = vector.load %arg1[%c0_26, %c24] : memref<8x96xbf16, #tpu.memory_space<vmem>>, vector<8x8xbf16>
    %c0_27 = arith.constant 0 : index
    %c56 = arith.constant 56 : index
    %63 = vector.load %arg1[%c0_27, %c56] : memref<8x96xbf16, #tpu.memory_space<vmem>>, vector<8x8xbf16>
    %c0_28 = arith.constant 0 : index
    %c88 = arith.constant 88 : index
    %64 = vector.load %arg1[%c0_28, %c88] : memref<8x96xbf16, #tpu.memory_space<vmem>>, vector<8x8xbf16>
    %cst_29 = arith.constant dense<0.000000e+00> : vector<8x8xf32>
    %65 = tpu.matmul %62, %63, %cst_29 {dimension_numbers = #tpu.dot_dimension_numbers<[1], [1], [0], [0], [0, 0, 1, 0], [], []>} : vector<8x8xbf16>, vector<8x8xbf16>, vector<8x8xf32> -> vector<8x8xf32>
    %cst_30 = arith.constant 0.353553385 : f32
    %66 = vector.broadcast %cst_30 : f32 to vector<8x8xf32>
    %67 = arith.mulf %65, %66 : vector<8x8xf32>
    %68 = vector.broadcast %1 : vector<1x8xf32> to vector<8x8xf32>
    %69 = arith.addf %67, %68 : vector<8x8xf32>
    %cst_31 = arith.constant dense<0xFF800000> : vector<8xf32>
    %70 = vector.multi_reduction <maximumf>, %69, %cst_31 [1] : vector<8x8xf32> to vector<8xf32>
    %71 = vector.shape_cast %70 : vector<8xf32> to vector<8x1xf32>
    %72 = vector.broadcast %71 : vector<8x1xf32> to vector<8x8xf32>
    %73 = arith.subf %69, %72 : vector<8x8xf32>
    %74 = math.exp %73 : vector<8x8xf32>
    %cst_32 = arith.constant dense<0.000000e+00> : vector<8xf32>
    %75 = vector.multi_reduction <add>, %74, %cst_32 [1] : vector<8x8xf32> to vector<8xf32>
    %76 = vector.shape_cast %75 : vector<8xf32> to vector<8x1xf32>
    %77 = tpu.reciprocal %76 {approx = true} : vector<8x1xf32> -> vector<8x1xf32>
    %78 = vector.broadcast %77 : vector<8x1xf32> to vector<8x8xf32>
    %79 = arith.mulf %74, %78 : vector<8x8xf32>
    %80 = arith.truncf %79 : vector<8x8xf32> to vector<8x8xbf16>
    %cst_33 = arith.constant dense<0.000000e+00> : vector<8x8xf32>
    %81 = tpu.matmul %80, %64, %cst_33 {dimension_numbers = #tpu.dot_dimension_numbers<[1], [0], [0], [1], [0, 0, 1, 1], [], []>} : vector<8x8xbf16>, vector<8x8xbf16>, vector<8x8xf32> -> vector<8x8xf32>
    %82 = tpu.concatenate %21, %41, %61, %81 in 1 : vector<8x8xf32>, vector<8x8xf32>, vector<8x8xf32>, vector<8x8xf32> -> vector<8x32xf32>
    %83 = arith.truncf %82 : vector<8x32xf32> to vector<8x32xbf16>
    %c0_34 = arith.constant 0 : index
    %c0_35 = arith.constant 0 : index
    %84 = vector.load %arg3[%c0_34, %c0_35] : memref<8x32xbf16, #tpu.memory_space<vmem>>, vector<8x32xbf16>
    tpu.vector_store %arg3[%c0_34, %c0_35], %83 {strides = array<i32>} : memref<8x32xbf16, #tpu.memory_space<vmem>>, vector<8x32xbf16>,
    return
  }
  func.func @transform_0(%arg0: i32) -> (i32, i32) {
    %c0_i32 = arith.constant 0 : i32
    %c0_i32_0 = arith.constant 0 : i32
    return %arg0, %c0_i32 : i32, i32
  }
  func.func @transform_1(%arg0: i32) -> (i32, i32, i32) {
    %c0_i32 = arith.constant 0 : i32
    %c0_i32_0 = arith.constant 0 : i32
    %c0_i32_1 = arith.constant 0 : i32
    return %arg0, %c0_i32, %c0_i32_0 : i32, i32, i32
  }
  func.func @transform_2(%arg0: i32) -> (i32, i32) {
    %c0_i32 = arith.constant 0 : i32
    %c0_i32_0 = arith.constant 0 : i32
    return %arg0, %c0_i32 : i32, i32
  }
}

module attributes {stable_mosaic.version = 11 : i64} {
  func.func @kernel(%arg0: i32, %arg1: memref<16x32xf32, #tpu.memory_space<vmem>>, %arg2: memref<16x32xbf16, #tpu.memory_space<vmem>>, %arg3: memref<1x32xf32, #tpu.memory_space<vmem>>, %arg4: memref<1x32xf32, #tpu.memory_space<vmem>>, %arg5: memref<16x32xbf16, #tpu.memory_space<vmem>>) attributes {dimension_semantics = [#tpu.dimension_semantics<parallel>], iteration_bounds = array<i64: 1>, scalar_prefetch = 0 : i64, scratch_operands = 0 : i64, tpu.core_type = #tpu.core_type<tc>, window_params = [{transform_indices = @transform_0, window_bounds = array<i64: 16, 32>}, {transform_indices = @transform_1, window_bounds = array<i64: 16, 32>}, {pipeline_mode = #tpu.pipeline_mode<synchronous>, transform_indices = @transform_2, window_bounds = array<i64: 1, 32>}, {pipeline_mode = #tpu.pipeline_mode<synchronous>, transform_indices = @transform_3, window_bounds = array<i64: 1, 32>}, {transform_indices = @transform_4, window_bounds = array<i64: 16, 32>}]} {
    %c0 = arith.constant 0 : index
    %c0_0 = arith.constant 0 : index
    %0 = vector.load %arg1[%c0, %c0_0] : memref<16x32xf32, #tpu.memory_space<vmem>>, vector<16x32xf32>
    %c0_1 = arith.constant 0 : index
    %c0_2 = arith.constant 0 : index
    %1 = vector.load %arg2[%c0_1, %c0_2] : memref<16x32xbf16, #tpu.memory_space<vmem>>, vector<16x32xbf16>
    %2 = arith.extf %1 : vector<16x32xbf16> to vector<16x32xf32>
    %3 = arith.addf %0, %2 : vector<16x32xf32>
    %c0_3 = arith.constant 0 : index
    %c0_4 = arith.constant 0 : index
    %4 = vector.load %arg3[%c0_3, %c0_4] : memref<1x32xf32, #tpu.memory_space<vmem>>, vector<1x32xf32>
    %c0_5 = arith.constant 0 : index
    %c0_6 = arith.constant 0 : index
    %5 = vector.load %arg4[%c0_5, %c0_6] : memref<1x32xf32, #tpu.memory_space<vmem>>, vector<1x32xf32>
    %cst = arith.constant dense<0.000000e+00> : vector<16xf32>
    %6 = vector.multi_reduction <add>, %3, %cst [1] : vector<16x32xf32> to vector<16xf32>
    %7 = vector.shape_cast %6 : vector<16xf32> to vector<16x1xf32>
    %cst_7 = arith.constant 3.200000e+01 : f32
    %8 = vector.broadcast %cst_7 : f32 to vector<16x1xf32>
    %9 = arith.divf %7, %8 : vector<16x1xf32>
    %10 = vector.broadcast %9 : vector<16x1xf32> to vector<16x32xf32>
    %11 = arith.subf %3, %10 : vector<16x32xf32>
    %12 = arith.mulf %11, %11 : vector<16x32xf32>
    %cst_8 = arith.constant dense<0.000000e+00> : vector<16xf32>
    %13 = vector.multi_reduction <add>, %12, %cst_8 [1] : vector<16x32xf32> to vector<16xf32>
    %14 = vector.shape_cast %13 : vector<16xf32> to vector<16x1xf32>
    %cst_9 = arith.constant 3.200000e+01 : f32
    %15 = vector.broadcast %cst_9 : f32 to vector<16x1xf32>
    %16 = arith.divf %14, %15 : vector<16x1xf32>
    %17 = vector.broadcast %9 : vector<16x1xf32> to vector<16x32xf32>
    %18 = arith.subf %3, %17 : vector<16x32xf32>
    %cst_10 = arith.constant 9.99999974E-6 : f32
    %19 = vector.broadcast %cst_10 : f32 to vector<16x1xf32>
    %20 = arith.addf %16, %19 : vector<16x1xf32>
    %21 = math.rsqrt %20 : vector<16x1xf32>
    %22 = vector.broadcast %21 : vector<16x1xf32> to vector<16x32xf32>
    %23 = arith.mulf %18, %22 : vector<16x32xf32>
    %24 = vector.broadcast %4 : vector<1x32xf32> to vector<16x32xf32>
    %25 = arith.mulf %23, %24 : vector<16x32xf32>
    %26 = vector.broadcast %5 : vector<1x32xf32> to vector<16x32xf32>
    %27 = arith.addf %25, %26 : vector<16x32xf32>
    %28 = arith.truncf %27 : vector<16x32xf32> to vector<16x32xbf16>
    %c0_11 = arith.constant 0 : index
    %c0_12 = arith.constant 0 : index
    %29 = vector.load %arg5[%c0_11, %c0_12] : memref<16x32xbf16, #tpu.memory_space<vmem>>, vector<16x32xbf16>
    tpu.vector_store %arg5[%c0_11, %c0_12], %28 {strides = array<i32>} : memref<16x32xbf16, #tpu.memory_space<vmem>>, vector<16x32xbf16>,
    return
  }
  func.func @transform_0(%arg0: i32) -> (i32, i32) {
    %c0_i32 = arith.constant 0 : i32
    %c0_i32_0 = arith.constant 0 : i32
    return %arg0, %c0_i32 : i32, i32
  }
  func.func @transform_1(%arg0: i32) -> (i32, i32) {
    %c0_i32 = arith.constant 0 : i32
    %c0_i32_0 = arith.constant 0 : i32
    return %arg0, %c0_i32 : i32, i32
  }
  func.func @transform_2(%arg0: i32) -> (i32, i32) {
    %c0_i32 = arith.constant 0 : i32
    %c0_i32_0 = arith.constant 0 : i32
    %c0_i32_1 = arith.constant 0 : i32
    return %c0_i32, %c0_i32_0 : i32, i32
  }
  func.func @transform_3(%arg0: i32) -> (i32, i32) {
    %c0_i32 = arith.constant 0 : i32
    %c0_i32_0 = arith.constant 0 : i32
    %c0_i32_1 = arith.constant 0 : i32
    return %c0_i32, %c0_i32_0 : i32, i32
  }
  func.func @transform_4(%arg0: i32) -> (i32, i32) {
    %c0_i32 = arith.constant 0 : i32
    %c0_i32_0 = arith.constant 0 : i32
    return %arg0, %c0_i32 : i32, i32
  }
}

module attributes {stable_mosaic.version = 11 : i64} {
  func.func @kernel(%arg0: i32, %arg1: i32, %arg2: i32, %arg3: memref<16x32xbf16, #tpu.memory_space<vmem>>, %arg4: memref<32x64xbf16, #tpu.memory_space<vmem>>, %arg5: memref<1x64xf32, #tpu.memory_space<vmem>>, %arg6: memref<16x64xbf16, #tpu.memory_space<vmem>>, %arg7: memref<16x64xf32, #tpu.memory_space<vmem>>) attributes {dimension_semantics = [#tpu.dimension_semantics<parallel>, #tpu.dimension_semantics<parallel>, #tpu.dimension_semantics<arbitrary>], iteration_bounds = array<i64: 1, 1, 1>, scalar_prefetch = 0 : i64, scratch_operands = 1 : i64, tpu.core_type = #tpu.core_type<tc>, window_params = [{transform_indices = @transform_0, window_bounds = array<i64: 16, 32>}, {transform_indices = @transform_1, window_bounds = array<i64: 32, 64>}, {transform_indices = @transform_2, window_bounds = array<i64: 1, 64>}, {transform_indices = @transform_3, window_bounds = array<i64: 16, 64>}]} {
    %c0_i32 = arith.constant 0 : i32
    %0 = arith.cmpi eq, %arg2, %c0_i32 : i32
    %1 = arith.extui %0 : i1 to i32
    %c0_i32_0 = arith.constant 0 : i32
    %2 = arith.cmpi ne, %1, %c0_i32_0 : i32
    scf.if %2 {
      %cst_10 = arith.constant 0.000000e+00 : f32
      %12 = vector.broadcast %cst_10 : f32 to vector<16x64xf32>
      %c0_11 = arith.constant 0 : index
      %c0_12 = arith.constant 0 : index
      %13 = vector.load %arg7[%c0_11, %c0_12] : memref<16x64xf32, #tpu.memory_space<vmem>>, vector<16x64xf32>
      tpu.vector_store %arg7[%c0_11, %c0_12], %12 {strides = array<i32>} : memref<16x64xf32, #tpu.memory_space<vmem>>, vector<16x64xf32>,
    } else {
    }
    %c0 = arith.constant 0 : index
    %c0_1 = arith.constant 0 : index
    %3 = vector.load %arg7[%c0, %c0_1] : memref<16x64xf32, #tpu.memory_space<vmem>>, vector<16x64xf32>
    %c0_2 = arith.constant 0 : index
    %c0_3 = arith.constant 0 : index
    %4 = vector.load %arg3[%c0_2, %c0_3] : memref<16x32xbf16, #tpu.memory_space<vmem>>, vector<16x32xbf16>
    %c0_4 = arith.constant 0 : index
    %c0_5 = arith.constant 0 : index
    %5 = vector.load %arg4[%c0_4, %c0_5] : memref<32x64xbf16, #tpu.memory_space<vmem>>, vector<32x64xbf16>
    %cst = arith.constant dense<0.000000e+00> : vector<16x64xf32>
    %6 = tpu.matmul %4, %5, %cst {dimension_numbers = #tpu.dot_dimension_numbers<[1], [0], [0], [1], [0, 0, 1, 1], [], []>} : vector<16x32xbf16>, vector<32x64xbf16>, vector<16x64xf32> -> vector<16x64xf32>
    %7 = arith.addf %3, %6 : vector<16x64xf32>
    %c0_6 = arith.constant 0 : index
    %c0_7 = arith.constant 0 : index
    %8 = vector.load %arg7[%c0_6, %c0_7] : memref<16x64xf32, #tpu.memory_space<vmem>>, vector<16x64xf32>
    tpu.vector_store %arg7[%c0_6, %c0_7], %7 {strides = array<i32>} : memref<16x64xf32, #tpu.memory_space<vmem>>, vector<16x64xf32>,
    %c0_i32_8 = arith.constant 0 : i32
    %9 = arith.cmpi eq, %arg2, %c0_i32_8 : i32
    %10 = arith.extui %9 : i1 to i32
    %c0_i32_9 = arith.constant 0 : i32
    %11 = arith.cmpi ne, %10, %c0_i32_9 : i32
    scf.if %11 {
      %c0_10 = arith.constant 0 : index
      %c0_11 = arith.constant 0 : index
      %12 = vector.load %arg7[%c0_10, %c0_11] : memref<16x64xf32, #tpu.memory_space<vmem>>, vector<16x64xf32>
      %c0_12 = arith.constant 0 : index
      %c0_13 = arith.constant 0 : index
      %13 = vector.load %arg5[%c0_12, %c0_13] : memref<1x64xf32, #tpu.memory_space<vmem>>, vector<1x64xf32>
      %14 = vector.broadcast %13 : vector<1x64xf32> to vector<16x64xf32>
      %15 = arith.addf %12, %14 : vector<16x64xf32>
      %16 = arith.mulf %15, %15 : vector<16x64xf32>
      %17 = arith.mulf %15, %16 : vector<16x64xf32>
      %cst_14 = arith.constant 4.471500e-02 : f32
      %18 = vector.broadcast %cst_14 : f32 to vector<16x64xf32>
      %19 = arith.mulf %18, %17 : vector<16x64xf32>
      %20 = arith.addf %15, %19 : vector<16x64xf32>
      %cst_15 = arith.constant 0.797884583 : f32
      %21 = vector.broadcast %cst_15 : f32 to vector<16x64xf32>
      %22 = arith.mulf %21, %20 : vector<16x64xf32>
      %23 = math.tanh %22 : vector<16x64xf32>
      %cst_16 = arith.constant 1.000000e+00 : f32
      %24 = vector.broadcast %cst_16 : f32 to vector<16x64xf32>
      %25 = arith.addf %24, %23 : vector<16x64xf32>
      %cst_17 = arith.constant 5.000000e-01 : f32
      %26 = vector.broadcast %cst_17 : f32 to vector<16x64xf32>
      %27 = arith.mulf %26, %25 : vector<16x64xf32>
      %28 = arith.mulf %15, %27 : vector<16x64xf32>
      %29 = arith.truncf %28 : vector<16x64xf32> to vector<16x64xbf16>
      %c0_18 = arith.constant 0 : index
      %c0_19 = arith.constant 0 : index
      %30 = vector.load %arg6[%c0_18, %c0_19] : memref<16x64xbf16, #tpu.memory_space<vmem>>, vector<16x64xbf16>
      tpu.vector_store %arg6[%c0_18, %c0_19], %29 {strides = array<i32>} : memref<16x64xbf16, #tpu.memory_space<vmem>>, vector<16x64xbf16>,
    } else {
    }
    return
  }
  func.func @transform_0(%arg0: i32, %arg1: i32, %arg2: i32) -> (i32, i32) {
    %c0_i32 = arith.constant 0 : i32
    return %arg0, %arg2 : i32, i32
  }
  func.func @transform_1(%arg0: i32, %arg1: i32, %arg2: i32) -> (i32, i32) {
    %c0_i32 = arith.constant 0 : i32
    return %arg2, %arg1 : i32, i32
  }
  func.func @transform_2(%arg0: i32, %arg1: i32, %arg2: i32) -> (i32, i32) {
    %c0_i32 = arith.constant 0 : i32
    %c0_i32_0 = arith.constant 0 : i32
    return %c0_i32, %arg1 : i32, i32
  }
  func.func @transform_3(%arg0: i32, %arg1: i32, %arg2: i32) -> (i32, i32) {
    %c0_i32 = arith.constant 0 : i32
    return %arg0, %arg1 : i32, i32
  }
}

module attributes {stable_mosaic.version = 11 : i64} {
  func.func @kernel(%arg0: i32, %arg1: i32, %arg2: i32, %arg3: memref<16x64xbf16, #tpu.memory_space<vmem>>, %arg4: memref<64x32xbf16, #tpu.memory_space<vmem>>, %arg5: memref<1x32xf32, #tpu.memory_space<vmem>>, %arg6: memref<16x32xf32, #tpu.memory_space<vmem>>, %arg7: memref<16x32xf32, #tpu.memory_space<vmem>>) attributes {dimension_semantics = [#tpu.dimension_semantics<parallel>, #tpu.dimension_semantics<parallel>, #tpu.dimension_semantics<arbitrary>], iteration_bounds = array<i64: 1, 1, 1>, scalar_prefetch = 0 : i64, scratch_operands = 1 : i64, tpu.core_type = #tpu.core_type<tc>, window_params = [{transform_indices = @transform_0, window_bounds = array<i64: 16, 64>}, {transform_indices = @transform_1, window_bounds = array<i64: 64, 32>}, {transform_indices = @transform_2, window_bounds = array<i64: 1, 32>}, {transform_indices = @transform_3, window_bounds = array<i64: 16, 32>}]} {
    %c0_i32 = arith.constant 0 : i32
    %0 = arith.cmpi eq, %arg2, %c0_i32 : i32
    %1 = arith.extui %0 : i1 to i32
    %c0_i32_0 = arith.constant 0 : i32
    %2 = arith.cmpi ne, %1, %c0_i32_0 : i32
    scf.if %2 {
      %cst_10 = arith.constant 0.000000e+00 : f32
      %12 = vector.broadcast %cst_10 : f32 to vector<16x32xf32>
      %c0_11 = arith.constant 0 : index
      %c0_12 = arith.constant 0 : index
      %13 = vector.load %arg7[%c0_11, %c0_12] : memref<16x32xf32, #tpu.memory_space<vmem>>, vector<16x32xf32>
      tpu.vector_store %arg7[%c0_11, %c0_12], %12 {strides = array<i32>} : memref<16x32xf32, #tpu.memory_space<vmem>>, vector<16x32xf32>,
    } else {
    }
    %c0 = arith.constant 0 : index
    %c0_1 = arith.constant 0 : index
    %3 = vector.load %arg7[%c0, %c0_1] : memref<16x32xf32, #tpu.memory_space<vmem>>, vector<16x32xf32>
    %c0_2 = arith.constant 0 : index
    %c0_3 = arith.constant 0 : index
    %4 = vector.load %arg3[%c0_2, %c0_3] : memref<16x64xbf16, #tpu.memory_space<vmem>>, vector<16x64xbf16>
    %c0_4 = arith.constant 0 : index
    %c0_5 = arith.constant 0 : index
    %5 = vector.load %arg4[%c0_4, %c0_5] : memref<64x32xbf16, #tpu.memory_space<vmem>>, vector<64x32xbf16>
    %cst = arith.constant dense<0.000000e+00> : vector<16x32xf32>
    %6 = tpu.matmul %4, %5, %cst {dimension_numbers = #tpu.dot_dimension_numbers<[1], [0], [0], [1], [0, 0, 1, 1], [], []>} : vector<16x64xbf16>, vector<64x32xbf16>, vector<16x32xf32> -> vector<16x32xf32>
    %7 = arith.addf %3, %6 : vector<16x32xf32>
    %c0_6 = arith.constant 0 : index
    %c0_7 = arith.constant 0 : index
    %8 = vector.load %arg7[%c0_6, %c0_7] : memref<16x32xf32, #tpu.memory_space<vmem>>, vector<16x32xf32>
    tpu.vector_store %arg7[%c0_6, %c0_7], %7 {strides = array<i32>} : memref<16x32xf32, #tpu.memory_space<vmem>>, vector<16x32xf32>,
    %c0_i32_8 = arith.constant 0 : i32
    %9 = arith.cmpi eq, %arg2, %c0_i32_8 : i32
    %10 = arith.extui %9 : i1 to i32
    %c0_i32_9 = arith.constant 0 : i32
    %11 = arith.cmpi ne, %10, %c0_i32_9 : i32
    scf.if %11 {
      %c0_10 = arith.constant 0 : index
      %c0_11 = arith.constant 0 : index
      %12 = vector.load %arg7[%c0_10, %c0_11] : memref<16x32xf32, #tpu.memory_space<vmem>>, vector<16x32xf32>
      %c0_12 = arith.constant 0 : index
      %c0_13 = arith.constant 0 : index
      %13 = vector.load %arg5[%c0_12, %c0_13] : memref<1x32xf32, #tpu.memory_space<vmem>>, vector<1x32xf32>
      %14 = vector.broadcast %13 : vector<1x32xf32> to vector<16x32xf32>
      %15 = arith.addf %12, %14 : vector<16x32xf32>
      %c0_14 = arith.constant 0 : index
      %c0_15 = arith.constant 0 : index
      %16 = vector.load %arg6[%c0_14, %c0_15] : memref<16x32xf32, #tpu.memory_space<vmem>>, vector<16x32xf32>
      tpu.vector_store %arg6[%c0_14, %c0_15], %15 {strides = array<i32>} : memref<16x32xf32, #tpu.memory_space<vmem>>, vector<16x32xf32>,
    } else {
    }
    return
  }
  func.func @transform_0(%arg0: i32, %arg1: i32, %arg2: i32) -> (i32, i32) {
    %c0_i32 = arith.constant 0 : i32
    return %arg0, %arg2 : i32, i32
  }
  func.func @transform_1(%arg0: i32, %arg1: i32, %arg2: i32) -> (i32, i32) {
    %c0_i32 = arith.constant 0 : i32
    return %arg2, %arg1 : i32, i32
  }
  func.func @transform_2(%arg0: i32, %arg1: i32, %arg2: i32) -> (i32, i32) {
    %c0_i32 = arith.constant 0 : i32
    %c0_i32_0 = arith.constant 0 : i32
    return %c0_i32, %arg1 : i32, i32
  }
  func.func @transform_3(%arg0: i32, %arg1: i32, %arg2: i32) -> (i32, i32) {
    %c0_i32 = arith.constant 0 : i32
    return %arg0, %arg1 : i32, i32
  }
}

module attributes {stable_mosaic.version = 11 : i64} {
  func.func @kernel(%arg0: i32, %arg1: i32, %arg2: i32, %arg3: memref<2x32xbf16, #tpu.memory_space<vmem>>, %arg4: memref<32x32xbf16, #tpu.memory_space<vmem>>, %arg5: memref<1x32xf32, #tpu.memory_space<vmem>>, %arg6: memref<2x32xf32, #tpu.memory_space<vmem>>, %arg7: memref<2x32xf32, #tpu.memory_space<vmem>>) attributes {dimension_semantics = [#tpu.dimension_semantics<parallel>, #tpu.dimension_semantics<parallel>, #tpu.dimension_semantics<arbitrary>], iteration_bounds = array<i64: 1, 1, 1>, scalar_prefetch = 0 : i64, scratch_operands = 1 : i64, tpu.core_type = #tpu.core_type<tc>, window_params = [{transform_indices = @transform_0, window_bounds = array<i64: 2, 32>}, {transform_indices = @transform_1, window_bounds = array<i64: 32, 32>}, {transform_indices = @transform_2, window_bounds = array<i64: 1, 32>}, {transform_indices = @transform_3, window_bounds = array<i64: 2, 32>}]} {
    %c0_i32 = arith.constant 0 : i32
    %0 = arith.cmpi eq, %arg2, %c0_i32 : i32
    %1 = arith.extui %0 : i1 to i32
    %c0_i32_0 = arith.constant 0 : i32
    %2 = arith.cmpi ne, %1, %c0_i32_0 : i32
    scf.if %2 {
      %cst_10 = arith.constant 0.000000e+00 : f32
      %12 = vector.broadcast %cst_10 : f32 to vector<2x32xf32>
      %c0_11 = arith.constant 0 : index
      %c0_12 = arith.constant 0 : index
      %13 = vector.load %arg7[%c0_11, %c0_12] : memref<2x32xf32, #tpu.memory_space<vmem>>, vector<2x32xf32>
      tpu.vector_store %arg7[%c0_11, %c0_12], %12 {strides = array<i32>} : memref<2x32xf32, #tpu.memory_space<vmem>>, vector<2x32xf32>,
    } else {
    }
    %c0 = arith.constant 0 : index
    %c0_1 = arith.constant 0 : index
    %3 = vector.load %arg7[%c0, %c0_1] : memref<2x32xf32, #tpu.memory_space<vmem>>, vector<2x32xf32>
    %c0_2 = arith.constant 0 : index
    %c0_3 = arith.constant 0 : index
    %4 = vector.load %arg3[%c0_2, %c0_3] : memref<2x32xbf16, #tpu.memory_space<vmem>>, vector<2x32xbf16>
    %c0_4 = arith.constant 0 : index
    %c0_5 = arith.constant 0 : index
    %5 = vector.load %arg4[%c0_4, %c0_5] : memref<32x32xbf16, #tpu.memory_space<vmem>>, vector<32x32xbf16>
    %cst = arith.constant dense<0.000000e+00> : vector<2x32xf32>
    %6 = tpu.matmul %4, %5, %cst {dimension_numbers = #tpu.dot_dimension_numbers<[1], [0], [0], [1], [0, 0, 1, 1], [], []>} : vector<2x32xbf16>, vector<32x32xbf16>, vector<2x32xf32> -> vector<2x32xf32>
    %7 = arith.addf %3, %6 : vector<2x32xf32>
    %c0_6 = arith.constant 0 : index
    %c0_7 = arith.constant 0 : index
    %8 = vector.load %arg7[%c0_6, %c0_7] : memref<2x32xf32, #tpu.memory_space<vmem>>, vector<2x32xf32>
    tpu.vector_store %arg7[%c0_6, %c0_7], %7 {strides = array<i32>} : memref<2x32xf32, #tpu.memory_space<vmem>>, vector<2x32xf32>,
    %c0_i32_8 = arith.constant 0 : i32
    %9 = arith.cmpi eq, %arg2, %c0_i32_8 : i32
    %10 = arith.extui %9 : i1 to i32
    %c0_i32_9 = arith.constant 0 : i32
    %11 = arith.cmpi ne, %10, %c0_i32_9 : i32
    scf.if %11 {
      %c0_10 = arith.constant 0 : index
      %c0_11 = arith.constant 0 : index
      %12 = vector.load %arg7[%c0_10, %c0_11] : memref<2x32xf32, #tpu.memory_space<vmem>>, vector<2x32xf32>
      %c0_12 = arith.constant 0 : index
      %c0_13 = arith.constant 0 : index
      %13 = vector.load %arg5[%c0_12, %c0_13] : memref<1x32xf32, #tpu.memory_space<vmem>>, vector<1x32xf32>
      %14 = vector.broadcast %13 : vector<1x32xf32> to vector<2x32xf32>
      %15 = arith.addf %12, %14 : vector<2x32xf32>
      %16 = math.tanh %15 : vector<2x32xf32>
      %c0_14 = arith.constant 0 : index
      %c0_15 = arith.constant 0 : index
      %17 = vector.load %arg6[%c0_14, %c0_15] : memref<2x32xf32, #tpu.memory_space<vmem>>, vector<2x32xf32>
      tpu.vector_store %arg6[%c0_14, %c0_15], %16 {strides = array<i32>} : memref<2x32xf32, #tpu.memory_space<vmem>>, vector<2x32xf32>,
    } else {
    }
    return
  }
  func.func @transform_0(%arg0: i32, %arg1: i32, %arg2: i32) -> (i32, i32) {
    %c0_i32 = arith.constant 0 : i32
    return %arg0, %arg2 : i32, i32
  }
  func.func @transform_1(%arg0: i32, %arg1: i32, %arg2: i32) -> (i32, i32) {
    %c0_i32 = arith.constant 0 : i32
    return %arg2, %arg1 : i32, i32
  }
  func.func @transform_2(%arg0: i32, %arg1: i32, %arg2: i32) -> (i32, i32) {
    %c0_i32 = arith.constant 0 : i32
    %c0_i32_0 = arith.constant 0 : i32
    return %c0_i32, %arg1 : i32, i32
  }
  func.func @transform_3(%arg0: i32, %arg1: i32, %arg2: i32) -> (i32, i32) {
    %c0_i32 = arith.constant 0 : i32
    return %arg0, %arg1 : i32, i32
  }
}

</mosaic_0001>

<llo_original>
// kernel: roberta_forward.17
$region0: #{roberta_forward.17}
  #allocation0 [shape = 'u32[]', space=smem, size = 0x4, offset = 0x4, fixed_abs, tag = 'smem constant byte address 0x4 - core index']
  #allocation1 [shape = 'u32[144,128]{1,0:T(1,128)}', space=vmem, size = 0x12000, scoped, tag = 'internal scratch']
  #allocation2 [shape = 'f32[16,96]{1,0:T(8,128)}', space=vmem, size = 0x2000, scoped, tag = 'scratch operand']
  %s0 = inlined_call_operand.vmem [shape: bf16[16,32], index: 0, kind: input, shape index: {}]
  %s1 = inlined_call_operand.vmem [shape: bf16[32,96], index: 1, kind: input, shape index: {}]
  %s2 = inlined_call_operand.vmem [shape: f32[1,96], index: 2, kind: input, shape index: {}]
  %s3 = inlined_call_operand.vmem [shape: bf16[16,96], index: 3, kind: output, shape index: {}]
  %s4 = sld [smem:[#allocation0]]
  $region30: #{roberta_forward.17} parent=0
    _
  %s6 = ssub.s32 1, %s4
  %s7 = scalar_select 0, %s6, %s4
  // Predicated region
  $region2: #{roberta_forward.17} parent=0 // pred_check
    _
  $region3: #{roberta_forward.17} parent=0 // pred_check_branch
    %9 = sbr.rel (0) target = $region5
  $region4: #{roberta_forward.17} parent=0 // pred_region
    _
  $region5: #{roberta_forward.17} parent=0 // pred_fallthru
    _
  // Predicated region
  $region6: #{roberta_forward.17} parent=0 // pred_check
    _
  $region7: #{roberta_forward.17} parent=0 // pred_check_branch
    %11 = sbr.rel (0) target = $region9
  $region8: #{roberta_forward.17} parent=0 // pred_region
    _
  $region9: #{roberta_forward.17} parent=0 // pred_fallthru
    _
  // Predicated region
  $region10: #{roberta_forward.17} parent=0 // pred_check
    _
  $region11: #{roberta_forward.17} parent=0 // pred_check_branch
    %13 = sbr.rel (0) target = $region13
  $region12: #{roberta_forward.17} parent=0 // pred_region
    _
  $region13: #{roberta_forward.17} parent=0 // pred_fallthru
    _
  %p15 = scmp.eq.s32.totalorder 0, 0
  // Predicated region
  $region14: #{roberta_forward.17} parent=0 // pred_check
    %p16 = pneg %p15
  $region15: #{roberta_forward.17} parent=0 // pred_check_branch
    %18 = sbr.rel (%p16) target = $region17
  $region16: #{roberta_forward.17} parent=0 // pred_region
    %vm19 = vcmask 785408
    %20 = vst.msk [vmem:[#allocation2] sm:$0xff] %vm19, 0.0
    %21 = vst.msk [vmem:[#allocation2 + $0x8] sm:$0xff] %vm19, 0.0
  $region17: #{roberta_forward.17} parent=0 // pred_fallthru
    _
  %v22 = vld [vmem:[#allocation2] sm:$0xff]
  %v23 = vld [vmem:[#allocation2 + $0x8] sm:$0xff]
  %v24 = vld [vmem:[%s0] sm:$0xf]
  %v25 = vld [vmem:[%s0 + $0x4] sm:$0xf]
  %v26 = vld [vmem:[%s1] sm:$0xf]
  %v27 = vld [vmem:[%s1 + $0x4] sm:$0xf]
  %v28 = vld [vmem:[%s1 + $0x8] sm:$0xf]
  %v29 = vld [vmem:[%s1 + $0xc] sm:$0xf]
  %v32 = vunpack.c.l.b16 %v24
  %v33 = vunpack.c.l.b16 %v25
  %v34 = vpack.c.b16 %v33, %v32
  %v39 = vunpack.c.l.b16 %v26
  %v40 = vunpack.c.l.b16 %v27
  %v41 = vunpack.c.l.b16 %v28
  %v42 = vunpack.c.l.b16 %v29
  %v43 = vpack.c.b16 %v40, %v39
  %v44 = vpack.c.b16 %v42, %v41
  %vm47 = vcmask 261120
  %v49 = vsel %vm47, %v34, 0
  %51 = vmatprep.subr.bf16.mxu0 0
  %52 = vmatpush1.bf16.msra.mxu0 %v43
  %53 = vmatprep.subr.bf16.mxu0 0
  %54 = vmatpush1.bf16.msra.mxu0 %v44
  %55 = vmatprep.subr.bf16.mxu0 0
  %56 = vmatpush1.bf16.msra.mxu0 0
  %57 = vmatprep.subr.bf16.mxu0 0
  %58 = vmatpush1.bf16.msra.mxu0 0
  %59 = vmatprep.subr.bf16.mxu0 0
  %60 = vmatpush1.bf16.msra.mxu0 0
  %61 = vmatprep.subr.bf16.mxu0 0
  %62 = vmatpush1.bf16.msra.mxu0 0
  %63 = vmatprep.subr.bf16.mxu0 0
  %64 = vmatpush1.bf16.msra.mxu0 0
  %65 = vmatprep.subr.bf16.mxu0 0
  %66 = vmatpush1.bf16.msra.mxu0 0
  %67 = vmatprep.subr.bf16.mxu0 0
  %68 = vmatpush1.bf16.msra.mxu0 0
  %69 = vmatprep.subr.bf16.mxu0 0
  %70 = vmatpush1.bf16.msra.mxu0 0
  %71 = vmatprep.subr.bf16.mxu0 0
  %72 = vmatpush1.bf16.msra.mxu0 0
  %73 = vmatprep.subr.bf16.mxu0 0
  %74 = vmatpush1.bf16.msra.mxu0 0
  %75 = vmatprep.subr.bf16.mxu0 0
  %76 = vmatpush1.bf16.msra.mxu0 0
  %77 = vmatprep.subr.bf16.mxu0 0
  %78 = vmatpush1.bf16.msra.mxu0 0
  %79 = vmatprep.subr.bf16.mxu0 0
  %80 = vmatpush1.bf16.msra.mxu0 0
  %81 = vmatprep.subr.bf16.mxu0 0
  %82 = vmatpush1.bf16.msra.mxu0 0
  %83 = vmatprep.mubr.bf16.mxu0 0
  %84 = vmatmul.mubr.bf16.gmra.mrb[0].mxu0 %v49
  %v85 = vpop.f32.mrb[0].mxu0
  %v86 = vadd.f32 0.0, %v85
  %v87 = vpop.f32.mrb[0].mxu0
  %v88 = vpop.f32.mrb[0].mxu0
  %v89 = vadd.f32 0.0, %v88
  %v90 = vpop.f32.mrb[0].mxu0
  %91 = vdwg.mxu0
  %v92 = vadd.f32 %v22, %v86
  %v93 = vadd.f32 %v23, %v89
  %vm94 = vcmask 785408
  %95 = vst.msk [vmem:[#allocation2] sm:$0xff] %vm94, %v92
  %96 = vst.msk [vmem:[#allocation2 + $0x8] sm:$0xff] %vm94, %v93
  // Predicated region
  $region18: #{roberta_forward.17} parent=0 // pred_check
    %p97 = pneg %p15
  $region19: #{roberta_forward.17} parent=0 // pred_check_branch
    %99 = sbr.rel (%p97) target = $region21
  $region20: #{roberta_forward.17} parent=0 // pred_region
    %v100 = vld [vmem:[#allocation2] sm:$0xff]
    %v101 = vld [vmem:[#allocation2 + $0x8] sm:$0xff]
    %v102 = vld [vmem:[%s2] sm:$0x1]
    %v104 = vlaneseq
    %v105 = vshrl.u32 %v104, 7
    %v106 = vsub.s32 0, %v105
    %v107 = vrot.slane %v102, %v106
    %v109 = vadd.f32 %v100, %v107
    %v110 = vadd.f32 %v101, %v107
    %v111 = vpack.c.bf16 %v110, %v109
    %v113 = vunpack.c.l.b16 %v111
    %v114 = vunpack.c.h.b16 %v111
    %v115 = vpack.c.b16 %v113, %v113
    %v116 = vpack.c.b16 %v114, %v114
    %vm119 = vcmask 781312
    %120 = vst.msk [vmem:[%s3] sm:$0xf] %vm119, %v115
    %121 = vst.msk [vmem:[%s3 + $0x4] sm:$0xf] %vm119, %v116
  $region21: #{roberta_forward.17} parent=0 // pred_fallthru
    _
  // Predicated region
  $region22: #{roberta_forward.17} parent=0 // pred_check
    _
  $region23: #{roberta_forward.17} parent=0 // pred_check_branch
    %123 = sbr.rel (0) target = $region25
  $region24: #{roberta_forward.17} parent=0 // pred_region
    _
  $region25: #{roberta_forward.17} parent=0 // pred_fallthru
    _
  // Predicated region
  $region26: #{roberta_forward.17} parent=0 // pred_check
    _
  $region27: #{roberta_forward.17} parent=0 // pred_check_branch
    %125 = sbr.rel (0) target = $region29
  $region28: #{roberta_forward.17} parent=0 // pred_region
    _
  $region29: #{roberta_forward.17} parent=0 // pred_fallthru
    _

// kernel: roberta_forward.16
$region0: #{roberta_forward.16}
  #allocation0 [shape = 'u32[]', space=smem, size = 0x4, offset = 0x4, fixed_abs, tag = 'smem constant byte address 0x4 - core index']
  #allocation1 [shape = 'u32[144,128]{1,0:T(1,128)}', space=vmem, size = 0x12000, scoped, tag = 'internal scratch']
  %s0 = inlined_call_operand.vmem [shape: f32[16,32], index: 0, kind: input, shape index: {}]
  %s1 = inlined_call_operand.vmem [shape: f32[1,32], index: 1, kind: input, shape index: {}]
  %s2 = inlined_call_operand.vmem [shape: f32[1,32], index: 2, kind: input, shape index: {}]
  %s3 = inlined_call_operand.vmem [shape: bf16[16,32], index: 3, kind: output, shape index: {}]
  %s4 = sld [smem:[#allocation0]]
  $region22: #{roberta_forward.16} parent=0
    _
  %s6 = ssub.s32 1, %s4
  %s7 = scalar_select 0, %s6, %s4
  // Predicated region
  $region2: #{roberta_forward.16} parent=0 // pred_check
    _
  $region3: #{roberta_forward.16} parent=0 // pred_check_branch
    %9 = sbr.rel (0) target = $region5
  $region4: #{roberta_forward.16} parent=0 // pred_region
    _
  $region5: #{roberta_forward.16} parent=0 // pred_fallthru
    _
  // Predicated region
  $region6: #{roberta_forward.16} parent=0 // pred_check
    _
  $region7: #{roberta_forward.16} parent=0 // pred_check_branch
    %11 = sbr.rel (0) target = $region9
  $region8: #{roberta_forward.16} parent=0 // pred_region
    _
  $region9: #{roberta_forward.16} parent=0 // pred_fallthru
    _
  // Predicated region
  $region10: #{roberta_forward.16} parent=0 // pred_check
    _
  $region11: #{roberta_forward.16} parent=0 // pred_check_branch
    %13 = sbr.rel (0) target = $region13
  $region12: #{roberta_forward.16} parent=0 // pred_region
    _
  $region13: #{roberta_forward.16} parent=0 // pred_fallthru
    _
  %v14 = vld [vmem:[%s0] sm:$0xff]
  %v15 = vld [vmem:[%s0 + $0x8] sm:$0xff]
  %v16 = vld [vmem:[%s1] sm:$0x1]
  %v17 = vld [vmem:[%s2] sm:$0x1]
  %vm18 = vcmask 261120
  %v19 = vsel %vm18, %v14, 0.0
  %20 = vadd.xlane.f32.xlu0 %v19
  %v21 = vpop.xlane.xlu0 %20
  %v22 = vsel %vm18, %v15, 0.0
  %23 = vadd.xlane.f32.xlu0 %v22
  %v24 = vpop.xlane.xlu0 %23
  %v25 = vrcp.pop 32.0
  %v26 = vmul.f32 %v21, %v25
  %v27 = vmul.f32 %v24, %v25
  %v28 = vsub.f32 %v14, %v26
  %v29 = vsub.f32 %v15, %v27
  %v30 = vmul.f32 %v28, %v28
  %v31 = vmul.f32 %v29, %v29
  %v32 = vsel %vm18, %v30, 0.0
  %33 = vadd.xlane.f32.xlu0 %v32
  %v34 = vpop.xlane.xlu0 %33
  %v35 = vsel %vm18, %v31, 0.0
  %36 = vadd.xlane.f32.xlu0 %v35
  %v37 = vpop.xlane.xlu0 %36
  %v38 = vmul.f32 %v34, %v25
  %v39 = vmul.f32 %v37, %v25
  %v40 = vadd.f32 %v38, 1e-05
  %v41 = vadd.f32 %v39, 1e-05
  %v42 = vrsqrt.pop %v40
  %v43 = vrsqrt.pop %v41
  %v44 = vmul.f32 %v28, %v42
  %v45 = vmul.f32 %v29, %v43
  %v47 = vlaneseq
  %v48 = vshrl.u32 %v47, 7
  %v49 = vsub.s32 0, %v48
  %v50 = vrot.slane %v16, %v49
  %v52 = vmul.f32 %v44, %v50
  %v53 = vmul.f32 %v45, %v50
  %v55 = vlaneseq
  %v56 = vshrl.u32 %v55, 7
  %v57 = vsub.s32 0, %v56
  %v58 = vrot.slane %v17, %v57
  %v60 = vadd.f32 %v52, %v58
  %v61 = vadd.f32 %v53, %v58
  %v62 = vpack.c.bf16 %v61, %v60
  %v64 = vunpack.c.l.b16 %v62
  %v65 = vunpack.c.h.b16 %v62
  %v66 = vpack.c.b16 %v64, %v64
  %v67 = vpack.c.b16 %v65, %v65
  %vm70 = vcmask 257024
  %71 = vst.msk [vmem:[%s3] sm:$0xf] %vm70, %v66
  %72 = vst.msk [vmem:[%s3 + $0x4] sm:$0xf] %vm70, %v67
  // Predicated region
  $region14: #{roberta_forward.16} parent=0 // pred_check
    _
  $region15: #{roberta_forward.16} parent=0 // pred_check_branch
    %74 = sbr.rel (0) target = $region17
  $region16: #{roberta_forward.16} parent=0 // pred_region
    _
  $region17: #{roberta_forward.16} parent=0 // pred_fallthru
    _
  // Predicated region
  $region18: #{roberta_forward.16} parent=0 // pred_check
    _
  $region19: #{roberta_forward.16} parent=0 // pred_check_branch
    %76 = sbr.rel (0) target = $region21
  $region20: #{roberta_forward.16} parent=0 // pred_region
    _
  $region21: #{roberta_forward.16} parent=0 // pred_fallthru
    _

// kernel: roberta_forward.19
$region0: #{roberta_forward.19}
  #allocation0 [shape = 'u32[]', space=smem, size = 0x4, offset = 0x4, fixed_abs, tag = 'smem constant byte address 0x4 - core index']
  #allocation1 [shape = 'u32[144,128]{1,0:T(1,128)}', space=vmem, size = 0x12000, scoped, tag = 'internal scratch']
  #allocation2 [shape = 'f32[16,32]{1,0:T(8,128)}', space=vmem, size = 0x2000, scoped, tag = 'scratch operand']
  %s0 = inlined_call_operand.vmem [shape: bf16[16,32], index: 0, kind: input, shape index: {}]
  %s1 = inlined_call_operand.vmem [shape: bf16[32,32], index: 1, kind: input, shape index: {}]
  %s2 = inlined_call_operand.vmem [shape: f32[1,32], index: 2, kind: input, shape index: {}]
  %s3 = inlined_call_operand.vmem [shape: f32[16,32], index: 3, kind: output, shape index: {}]
  %s4 = sld [smem:[#allocation0]]
  $region30: #{roberta_forward.19} parent=0
    _
  %s6 = ssub.s32 1, %s4
  %s7 = scalar_select 0, %s6, %s4
  // Predicated region
  $region2: #{roberta_forward.19} parent=0 // pred_check
    _
  $region3: #{roberta_forward.19} parent=0 // pred_check_branch
    %9 = sbr.rel (0) target = $region5
  $region4: #{roberta_forward.19} parent=0 // pred_region
    _
  $region5: #{roberta_forward.19} parent=0 // pred_fallthru
    _
  // Predicated region
  $region6: #{roberta_forward.19} parent=0 // pred_check
    _
  $region7: #{roberta_forward.19} parent=0 // pred_check_branch
    %11 = sbr.rel (0) target = $region9
  $region8: #{roberta_forward.19} parent=0 // pred_region
    _
  $region9: #{roberta_forward.19} parent=0 // pred_fallthru
    _
  // Predicated region
  $region10: #{roberta_forward.19} parent=0 // pred_check
    _
  $region11: #{roberta_forward.19} parent=0 // pred_check_branch
    %13 = sbr.rel (0) target = $region13
  $region12: #{roberta_forward.19} parent=0 // pred_region
    _
  $region13: #{roberta_forward.19} parent=0 // pred_fallthru
    _
  %p15 = scmp.eq.s32.totalorder 0, 0
  // Predicated region
  $region14: #{roberta_forward.19} parent=0 // pred_check
    %p16 = pneg %p15
  $region15: #{roberta_forward.19} parent=0 // pred_check_branch
    %18 = sbr.rel (%p16) target = $region17
  $region16: #{roberta_forward.19} parent=0 // pred_region
    %vm19 = vcmask 261120
    %20 = vst.msk [vmem:[#allocation2] sm:$0xff] %vm19, 0.0
    %21 = vst.msk [vmem:[#allocation2 + $0x8] sm:$0xff] %vm19, 0.0
  $region17: #{roberta_forward.19} parent=0 // pred_fallthru
    _
  %v22 = vld [vmem:[#allocation2] sm:$0xff]
  %v23 = vld [vmem:[#allocation2 + $0x8] sm:$0xff]
  %v24 = vld [vmem:[%s0] sm:$0xf]
  %v25 = vld [vmem:[%s0 + $0x4] sm:$0xf]
  %v26 = vld [vmem:[%s1] sm:$0xf]
  %v27 = vld [vmem:[%s1 + $0x4] sm:$0xf]
  %v28 = vld [vmem:[%s1 + $0x8] sm:$0xf]
  %v29 = vld [vmem:[%s1 + $0xc] sm:$0xf]
  %v32 = vunpack.c.l.b16 %v24
  %v33 = vunpack.c.l.b16 %v25
  %v34 = vpack.c.b16 %v33, %v32
  %v39 = vunpack.c.l.b16 %v26
  %v40 = vunpack.c.l.b16 %v27
  %v41 = vunpack.c.l.b16 %v28
  %v42 = vunpack.c.l.b16 %v29
  %v43 = vpack.c.b16 %v40, %v39
  %v44 = vpack.c.b16 %v42, %v41
  %vm47 = vcmask 261120
  %v49 = vsel %vm47, %v34, 0
  %51 = vmatprep.subr.bf16.mxu0 0
  %52 = vmatpush1.bf16.msra.mxu0 %v43
  %53 = vmatprep.subr.bf16.mxu0 0
  %54 = vmatpush1.bf16.msra.mxu0 %v44
  %55 = vmatprep.subr.bf16.mxu0 0
  %56 = vmatpush1.bf16.msra.mxu0 0
  %57 = vmatprep.subr.bf16.mxu0 0
  %58 = vmatpush1.bf16.msra.mxu0 0
  %59 = vmatprep.subr.bf16.mxu0 0
  %60 = vmatpush1.bf16.msra.mxu0 0
  %61 = vmatprep.subr.bf16.mxu0 0
  %62 = vmatpush1.bf16.msra.mxu0 0
  %63 = vmatprep.subr.bf16.mxu0 0
  %64 = vmatpush1.bf16.msra.mxu0 0
  %65 = vmatprep.subr.bf16.mxu0 0
  %66 = vmatpush1.bf16.msra.mxu0 0
  %67 = vmatprep.subr.bf16.mxu0 0
  %68 = vmatpush1.bf16.msra.mxu0 0
  %69 = vmatprep.subr.bf16.mxu0 0
  %70 = vmatpush1.bf16.msra.mxu0 0
  %71 = vmatprep.subr.bf16.mxu0 0
  %72 = vmatpush1.bf16.msra.mxu0 0
  %73 = vmatprep.subr.bf16.mxu0 0
  %74 = vmatpush1.bf16.msra.mxu0 0
  %75 = vmatprep.subr.bf16.mxu0 0
  %76 = vmatpush1.bf16.msra.mxu0 0
  %77 = vmatprep.subr.bf16.mxu0 0
  %78 = vmatpush1.bf16.msra.mxu0 0
  %79 = vmatprep.subr.bf16.mxu0 0
  %80 = vmatpush1.bf16.msra.mxu0 0
  %81 = vmatprep.subr.bf16.mxu0 0
  %82 = vmatpush1.bf16.msra.mxu0 0
  %83 = vmatprep.mubr.bf16.mxu0 0
  %84 = vmatmul.mubr.bf16.gmra.mrb[0].mxu0 %v49
  %v85 = vpop.f32.mrb[0].mxu0
  %v86 = vadd.f32 0.0, %v85
  %v87 = vpop.f32.mrb[0].mxu0
  %v88 = vpop.f32.mrb[0].mxu0
  %v89 = vadd.f32 0.0, %v88
  %v90 = vpop.f32.mrb[0].mxu0
  %91 = vdwg.mxu0
  %v92 = vadd.f32 %v22, %v86
  %v93 = vadd.f32 %v23, %v89
  %94 = vst.msk [vmem:[#allocation2] sm:$0xff] %vm47, %v92
  %95 = vst.msk [vmem:[#allocation2 + $0x8] sm:$0xff] %vm47, %v93
  // Predicated region
  $region18: #{roberta_forward.19} parent=0 // pred_check
    %p96 = pneg %p15
  $region19: #{roberta_forward.19} parent=0 // pred_check_branch
    %98 = sbr.rel (%p96) target = $region21
  $region20: #{roberta_forward.19} parent=0 // pred_region
    %v99 = vld [vmem:[#allocation2] sm:$0xff]
    %v100 = vld [vmem:[#allocation2 + $0x8] sm:$0xff]
    %v101 = vld [vmem:[%s2] sm:$0x1]
    %v103 = vlaneseq
    %v104 = vshrl.u32 %v103, 7
    %v105 = vsub.s32 0, %v104
    %v106 = vrot.slane %v101, %v105
    %v108 = vadd.f32 %v99, %v106
    %v109 = vadd.f32 %v100, %v106
    %110 = vst.msk [vmem:[%s3] sm:$0xff] %vm47, %v108
    %111 = vst.msk [vmem:[%s3 + $0x8] sm:$0xff] %vm47, %v109
  $region21: #{roberta_forward.19} parent=0 // pred_fallthru
    _
  // Predicated region
  $region22: #{roberta_forward.19} parent=0 // pred_check
    _
  $region23: #{roberta_forward.19} parent=0 // pred_check_branch
    %113 = sbr.rel (0) target = $region25
  $region24: #{roberta_forward.19} parent=0 // pred_region
    _
  $region25: #{roberta_forward.19} parent=0 // pred_fallthru
    _
  // Predicated region
  $region26: #{roberta_forward.19} parent=0 // pred_check
    _
  $region27: #{roberta_forward.19} parent=0 // pred_check_branch
    %115 = sbr.rel (0) target = $region29
  $region28: #{roberta_forward.19} parent=0 // pred_region
    _
  $region29: #{roberta_forward.19} parent=0 // pred_fallthru
    _

// kernel: roberta_forward.18
$region0: #{roberta_forward.18}
  #allocation0 [shape = 'u32[]', space=smem, size = 0x4, offset = 0x4, fixed_abs, tag = 'smem constant byte address 0x4 - core index']
  #allocation1 [shape = 'u32[144,128]{1,0:T(1,128)}', space=vmem, size = 0x12000, scoped, tag = 'internal scratch']
  %s0 = inlined_call_operand.vmem [shape: bf16[16,96], index: 0, kind: input, shape index: {}]
  %s1 = inlined_call_operand.vmem [shape: f32[2,1,8], index: 1, kind: input, shape index: {}]
  %s2 = inlined_call_operand.vmem [shape: bf16[16,32], index: 2, kind: output, shape index: {}]
  %s3 = sld [smem:[#allocation0]]
  $region41: #{roberta_forward.18} parent=0
    _
  %s5 = ssub.s32 1, %s3
  %s6 = scalar_select 0, %s5, %s3
  loop: start=0, step=1, limit=4
  $region2: #{roberta_forward.18} parent=0 // loop_pre_header
    _
  $region3: #{roberta_forward.18} parent=0 // loop_header
    %s8 = sphi 0, %s12
    %p9 = scmp.ge.s32.totalorder %s8, 4
    %s18 = sphi 0, %s20
    %s21 = sphi 0, %s18
    %s22 = sphi 0, %s21
    %s38 = sphi 0, %s22
    %s44 = sphi 0, %s46
    %s47 = sphi 0, %s44
    %s48 = sphi 0, %s47
    %s64 = sphi 0, %s48
    %s70 = sphi 0, %s72
    %s73 = sphi 0, %s70
    %s74 = sphi 0, %s73
    %s90 = sphi 0, %s74
  $region4: #{roberta_forward.18} parent=0 // loop_header_branch
    %11 = sbr.rel (%p9) target = $region8
  $region5: #{roberta_forward.18} parent=0 // loop_body
    %s13 = ssub.s32 %s8, 1
    %s14 = ssub.s32 %s8, 2
    %s15 = sadd.s32 %s8, 1
    %s16 = ssub.s32 %s8, %s15
    %p17 = scmp.eq.s32.totalorder %s16, 0
    %s19 = sadd.s32 %s18, 1
    %s20 = scalar_select %p17, %s18, %s19
    %p23 = pneg %p17
    %p24 = scmp.eq.s32.totalorder %s8, 1
    %p25 = por %p23, %p24
    %p26 = scmp.ne.s32.totalorder %s18, %s21
    %p27 = scmp.eq.s32.totalorder %s8, 0
    %p28 = por %p26, %p27
    %p29 = scmp.ne.s32.totalorder %s18, %s21
    %p30 = scmp.eq.s32.totalorder %s13, 1
    %p31 = por %p29, %p30
    %p32 = scmp.ne.s32.totalorder %s21, %s22
    %p33 = scmp.eq.s32.totalorder %s13, 0
    %p34 = por %p32, %p33
    %p35 = scmp.ne.s32.totalorder %s21, %s22
    %p36 = scmp.eq.s32.totalorder %s14, 1
    %p37 = por %p35, %p36
    %p39 = scmp.ne.s32.totalorder %s22, %s38
    %p40 = scmp.eq.s32.totalorder %s14, 0
    %p41 = por %p39, %p40
    %s42 = ssub.s32 %s8, %s15
    %p43 = scmp.eq.s32.totalorder %s42, 0
    %s45 = sadd.s32 %s44, 1
    %s46 = scalar_select %p43, %s44, %s45
    %p49 = pneg %p43
    %p50 = scmp.eq.s32.totalorder %s8, 1
    %p51 = por %p49, %p50
    %p52 = scmp.ne.s32.totalorder %s44, %s47
    %p53 = scmp.eq.s32.totalorder %s8, 0
    %p54 = por %p52, %p53
    %p55 = scmp.ne.s32.totalorder %s44, %s47
    %p56 = scmp.eq.s32.totalorder %s13, 1
    %p57 = por %p55, %p56
    %p58 = scmp.ne.s32.totalorder %s47, %s48
    %p59 = scmp.eq.s32.totalorder %s13, 0
    %p60 = por %p58, %p59
    %p61 = scmp.ne.s32.totalorder %s47, %s48
    %p62 = scmp.eq.s32.totalorder %s14, 1
    %p63 = por %p61, %p62
    %p65 = scmp.ne.s32.totalorder %s48, %s64
    %p66 = scmp.eq.s32.totalorder %s14, 0
    %p67 = por %p65, %p66
    %s68 = ssub.s32 %s8, %s15
    %p69 = scmp.eq.s32.totalorder %s68, 0
    %s71 = sadd.s32 %s70, 1
    %s72 = scalar_select %p69, %s70, %s71
    %p75 = pneg %p69
    %p76 = scmp.eq.s32.totalorder %s8, 1
    %p77 = por %p75, %p76
    %p78 = scmp.ne.s32.totalorder %s70, %s73
    %p79 = scmp.eq.s32.totalorder %s8, 0
    %p80 = por %p78, %p79
    %p81 = scmp.ne.s32.totalorder %s70, %s73
    %p82 = scmp.eq.s32.totalorder %s13, 1
    %p83 = por %p81, %p82
    %p84 = scmp.ne.s32.totalorder %s73, %s74
    %p85 = scmp.eq.s32.totalorder %s13, 0
    %p86 = por %p84, %p85
    %p87 = scmp.ne.s32.totalorder %s73, %s74
    %p88 = scmp.eq.s32.totalorder %s14, 1
    %p89 = por %p87, %p88
    %p91 = scmp.ne.s32.totalorder %s74, %s90
    %p92 = scmp.eq.s32.totalorder %s14, 0
    %p93 = por %p91, %p92
    %p94 = scmp.le.s32.totalorder 1, %s8
    %p95 = scmp.lt.s32.totalorder %s8, 3
    %p96 = pnand %p94, %p95
    %p97 = pneg %p96
    // Predicated region
    $region9: #{roberta_forward.18} parent=5 // pred_check
      _
    $region10: #{roberta_forward.18} parent=5 // pred_check_branch
      %99 = sbr.rel (%p96) target = $region12
    $region11: #{roberta_forward.18} parent=5 // pred_region
      %s100 = ssub.s32 %s8, 1
    $region12: #{roberta_forward.18} parent=5 // pred_fallthru
      _
    %p101 = scmp.lt.s32.totalorder %s8, 2
    // Predicated region
    $region13: #{roberta_forward.18} parent=5 // pred_check
      %p102 = pneg %p101
    $region14: #{roberta_forward.18} parent=5 // pred_check_branch
      %104 = sbr.rel (%p102) target = $region16
    $region15: #{roberta_forward.18} parent=5 // pred_region
      // Predicated region
      $region17: #{roberta_forward.18} parent=15 // pred_check
        %p105 = pneg %p28
      $region18: #{roberta_forward.18} parent=15 // pred_check_branch
        %107 = sbr.rel (%p105) target = $region20
      $region19: #{roberta_forward.18} parent=15 // pred_region
        %p108 = scmp.lt.s32.totalorder %s8, 1
        %s109 = scalar_select %p108, %s8, 1
        %s110 = smul.addr %s109, 4
        %s111 = scalar_lea.vmem %s0, %s110
      $region20: #{roberta_forward.18} parent=15 // pred_fallthru
        _
      // Predicated region
      $region21: #{roberta_forward.18} parent=15 // pred_check
        %p112 = pneg %p54
      $region22: #{roberta_forward.18} parent=15 // pred_check_branch
        %114 = sbr.rel (%p112) target = $region24
      $region23: #{roberta_forward.18} parent=15 // pred_region
        %p115 = scmp.lt.s32.totalorder %s8, 1
        %s116 = scalar_select %p115, %s8, 1
        %s117 = scalar_lea.vmem %s1, %s116
      $region24: #{roberta_forward.18} parent=15 // pred_fallthru
        _
    $region16: #{roberta_forward.18} parent=5 // pred_fallthru
      _
    %p118 = scmp.le.s32.totalorder 1, %s8
    %p119 = scmp.lt.s32.totalorder %s8, 3
    %p120 = pnand %p118, %p119
    %p121 = pneg %p120
    // Predicated region
    $region25: #{roberta_forward.18} parent=5 // pred_check
      _
    $region26: #{roberta_forward.18} parent=5 // pred_check_branch
      %123 = sbr.rel (%p120) target = $region28
    $region27: #{roberta_forward.18} parent=5 // pred_region
      %s124 = ssub.s32 %s8, 1
      %p125 = scmp.lt.s32.totalorder %s13, 1
      %s126 = scalar_select %p125, %s13, 1
      %s127 = smul.addr %s126, 4
      %s128 = scalar_lea.vmem %s0, %s127
      %p129 = pneg %p34
      %p130 = pneg %p31
      %p131 = scmp.lt.s32.totalorder %s13, 1
      %s132 = scalar_select %p131, %s13, 1
      %s133 = scalar_lea.vmem %s1, %s132
      %p134 = pneg %p60
      %p135 = pneg %p57
      %p136 = pneg %p86
      %p137 = pneg %p83
      %p138 = scmp.lt.s32.totalorder %s13, 1
      %s139 = scalar_select %p138, %s13, 1
      %s140 = smul.addr %s139, 4
      %s141 = scalar_lea.vmem %s2, %s140
      %p142 = scmp.lt.s32.totalorder %s13, 1
      %s143 = scalar_select %p142, %s13, 1
      %s144 = smul.addr %s143, 4
      %s145 = scalar_lea.vmem %s0, %s144
      %p146 = scmp.lt.s32.totalorder %s13, 1
      %s147 = scalar_select %p146, %s13, 1
      %s148 = scalar_lea.vmem %s1, %s147
      %p149 = scmp.lt.s32.totalorder %s13, 1
      %s150 = scalar_select %p149, %s13, 1
      %s151 = smul.addr %s150, 4
      %s152 = scalar_lea.vmem %s2, %s151
      %v154 = vld [vmem:[%s148] sm:$0x1]
      %v155 = vld [vmem:[%s145] sm:$0xf]
      %v157 = vunpack.c.l.b16 %v155
      %v158 = vpack.c.b16 %v157, %v157
      %159 = vrot.lane.b32.xlu0 %v158, 96
      %v160 = vpop.permute.xlu0 %159
      %vm161 = vcmask 64512
      %v163 = vsel %vm161, %v155, 0
      %v166 = vsel %vm161, %v160, 0
      %168 = vmatprep.subr.bf16.mxu0 0
      %169 = vmatpush1.bf16.xpose.msra.mxu0 %v166
      %170 = vmatprep.subr.bf16.mxu0 0
      %171 = vmatpush1.bf16.xpose.msra.mxu0 0
      %172 = vmatprep.subr.bf16.mxu0 0
      %173 = vmatpush1.bf16.xpose.msra.mxu0 0
      %174 = vmatprep.subr.bf16.mxu0 0
      %175 = vmatpush1.bf16.xpose.msra.mxu0 0
      %176 = vmatprep.subr.bf16.mxu0 0
      %177 = vmatpush1.bf16.xpose.msra.mxu0 0
      %178 = vmatprep.subr.bf16.mxu0 0
      %179 = vmatpush1.bf16.xpose.msra.mxu0 0
      %180 = vmatprep.subr.bf16.mxu0 0
      %181 = vmatpush1.bf16.xpose.msra.mxu0 0
      %182 = vmatprep.subr.bf16.mxu0 0
      %183 = vmatpush1.bf16.xpose.msra.mxu0 0
      %184 = vmatprep.subr.bf16.mxu0 0
      %185 = vmatpush1.bf16.xpose.msra.mxu0 0
      %186 = vmatprep.subr.bf16.mxu0 0
      %187 = vmatpush1.bf16.xpose.msra.mxu0 0
      %188 = vmatprep.subr.bf16.mxu0 0
      %189 = vmatpush1.bf16.xpose.msra.mxu0 0
      %190 = vmatprep.subr.bf16.mxu0 0
      %191 = vmatpush1.bf16.xpose.msra.mxu0 0
      %192 = vmatprep.subr.bf16.mxu0 0
      %193 = vmatpush1.bf16.xpose.msra.mxu0 0
      %194 = vmatprep.subr.bf16.mxu0 0
      %195 = vmatpush1.bf16.xpose.msra.mxu0 0
      %196 = vmatprep.subr.bf16.mxu0 0
      %197 = vmatpush1.bf16.xpose.msra.mxu0 0
      %198 = vmatprep.subr.bf16.mxu0 0
      %199 = vmatpush1.bf16.xpose.msra.mxu0 0
      %200 = vmatprep.mubr.bf16.mxu0 0
      %201 = vmatmul.mubr.bf16.gmra.mrb[0].mxu0 %v163
      %v202 = vpop.f32.mrb[0].mxu0
      %v203 = vadd.f32 0.0, %v202
      %v204 = vpop.f32.mrb[0].mxu0
      %v205 = vpop.f32.mrb[0].mxu0
      %v206 = vpop.f32.mrb[0].mxu0
      %207 = vdwg.mxu0
      %v208 = vmul.f32 %v203, 0.35355338
      %v210 = vlaneseq
      %v211 = vshrl.u32 %v210, 7
      %v212 = vsub.s32 0, %v211
      %v213 = vrot.slane %v154, %v212
      %v215 = vadd.f32 %v208, %v213
      %v216 = vsel %vm161, %v215, -inf
      %217 = vmax.xlane.f32.xlu0 %v216
      %v218 = vpop.xlane.xlu0 %217
      %v219 = vsub.f32 %v215, %v218
      %v220 = vmul.f32 %v219, 1.442695
      %v221 = vpow.pop %v220
      %v222 = vsel %vm161, %v221, 0.0
      %223 = vadd.xlane.f32.xlu0 %v222
      %v224 = vpop.xlane.xlu0 %223
      %v225 = vrcp.pop %v224
      %v226 = vmul.f32 %v221, %v225
      %v227 = vpack.c.bf16 %v226, %v226
      %228 = vrot.lane.b32.xlu0 %v158, 64
      %v229 = vpop.permute.xlu0 %228
      %v231 = vsel %vm161, %v227, 0
      %vm233 = vcmask 1043456
      %v235 = vsel %vm233, %v229, 0
      %237 = vmatprep.subr.bf16.mxu0 0
      %238 = vmatpush1.bf16.msra.mxu0 %v235
      %239 = vmatprep.subr.bf16.mxu0 0
      %240 = vmatpush1.bf16.msra.mxu0 0
      %241 = vmatprep.subr.bf16.mxu0 0
      %242 = vmatpush1.bf16.msra.mxu0 0
      %243 = vmatprep.subr.bf16.mxu0 0
      %244 = vmatpush1.bf16.msra.mxu0 0
      %245 = vmatprep.subr.bf16.mxu0 0
      %246 = vmatpush1.bf16.msra.mxu0 0
      %247 = vmatprep.subr.bf16.mxu0 0
      %248 = vmatpush1.bf16.msra.mxu0 0
      %249 = vmatprep.subr.bf16.mxu0 0
      %250 = vmatpush1.bf16.msra.mxu0 0
      %251 = vmatprep.subr.bf16.mxu0 0
      %252 = vmatpush1.bf16.msra.mxu0 0
      %253 = vmatprep.subr.bf16.mxu0 0
      %254 = vmatpush1.bf16.msra.mxu0 0
      %255 = vmatprep.subr.bf16.mxu0 0
      %256 = vmatpush1.bf16.msra.mxu0 0
      %257 = vmatprep.subr.bf16.mxu0 0
      %258 = vmatpush1.bf16.msra.mxu0 0
      %259 = vmatprep.subr.bf16.mxu0 0
      %260 = vmatpush1.bf16.msra.mxu0 0
      %261 = vmatprep.subr.bf16.mxu0 0
      %262 = vmatpush1.bf16.msra.mxu0 0
      %263 = vmatprep.subr.bf16.mxu0 0
      %264 = vmatpush1.bf16.msra.mxu0 0
      %265 = vmatprep.subr.bf16.mxu0 0
      %266 = vmatpush1.bf16.msra.mxu0 0
      %267 = vmatprep.subr.bf16.mxu0 0
      %268 = vmatpush1.bf16.msra.mxu0 0
      %269 = vmatprep.mubr.bf16.mxu0 0
      %270 = vmatmul.mubr.bf16.gmra.mrb[0].mxu0 %v231
      %v271 = vpop.f32.mrb[0].mxu0
      %v272 = vadd.f32 0.0, %v271
      %v273 = vpop.f32.mrb[0].mxu0
      %v274 = vpop.f32.mrb[0].mxu0
      %v275 = vpop.f32.mrb[0].mxu0
      %276 = vdwg.mxu0
      %277 = vrot.lane.b32.xlu0 %v158, 120
      %v278 = vpop.permute.xlu0 %277
      %279 = vrot.lane.b32.xlu0 %v158, 88
      %v280 = vpop.permute.xlu0 %279
      %v282 = vsel %vm161, %v278, 0
      %v285 = vsel %vm161, %v280, 0
      %287 = vmatprep.subr.bf16.mxu0 0
      %288 = vmatpush1.bf16.xpose.msra.mxu0 %v285
      %289 = vmatprep.subr.bf16.mxu0 0
      %290 = vmatpush1.bf16.xpose.msra.mxu0 0
      %291 = vmatprep.subr.bf16.mxu0 0
      %292 = vmatpush1.bf16.xpose.msra.mxu0 0
      %293 = vmatprep.subr.bf16.mxu0 0
      %294 = vmatpush1.bf16.xpose.msra.mxu0 0
      %295 = vmatprep.subr.bf16.mxu0 0
      %296 = vmatpush1.bf16.xpose.msra.mxu0 0
      %297 = vmatprep.subr.bf16.mxu0 0
      %298 = vmatpush1.bf16.xpose.msra.mxu0 0
      %299 = vmatprep.subr.bf16.mxu0 0
      %300 = vmatpush1.bf16.xpose.msra.mxu0 0
      %301 = vmatprep.subr.bf16.mxu0 0
      %302 = vmatpush1.bf16.xpose.msra.mxu0 0
      %303 = vmatprep.subr.bf16.mxu0 0
      %304 = vmatpush1.bf16.xpose.msra.mxu0 0
      %305 = vmatprep.subr.bf16.mxu0 0
      %306 = vmatpush1.bf16.xpose.msra.mxu0 0
      %307 = vmatprep.subr.bf16.mxu0 0
      %308 = vmatpush1.bf16.xpose.msra.mxu0 0
      %309 = vmatprep.subr.bf16.mxu0 0
      %310 = vmatpush1.bf16.xpose.msra.mxu0 0
      %311 = vmatprep.subr.bf16.mxu0 0
      %312 = vmatpush1.bf16.xpose.msra.mxu0 0
      %313 = vmatprep.subr.bf16.mxu0 0
      %314 = vmatpush1.bf16.xpose.msra.mxu0 0
      %315 = vmatprep.subr.bf16.mxu0 0
      %316 = vmatpush1.bf16.xpose.msra.mxu0 0
      %317 = vmatprep.subr.bf16.mxu0 0
      %318 = vmatpush1.bf16.xpose.msra.mxu0 0
      %319 = vmatprep.mubr.bf16.mxu0 0
      %320 = vmatmul.mubr.bf16.gmra.mrb[0].mxu0 %v282
      %v321 = vpop.f32.mrb[0].mxu0
      %v322 = vadd.f32 0.0, %v321
      %v323 = vpop.f32.mrb[0].mxu0
      %v324 = vpop.f32.mrb[0].mxu0
      %v325 = vpop.f32.mrb[0].mxu0
      %326 = vdwg.mxu0
      %v327 = vmul.f32 %v322, 0.35355338
      %v328 = vadd.f32 %v327, %v213
      %v329 = vsel %vm161, %v328, -inf
      %330 = vmax.xlane.f32.xlu0 %v329
      %v331 = vpop.xlane.xlu0 %330
      %v332 = vsub.f32 %v328, %v331
      %v333 = vmul.f32 %v332, 1.442695
      %v334 = vpow.pop %v333
      %v335 = vsel %vm161, %v334, 0.0
      %336 = vadd.xlane.f32.xlu0 %v335
      %v337 = vpop.xlane.xlu0 %336
      %v338 = vrcp.pop %v337
      %v339 = vmul.f32 %v334, %v338
      %v340 = vpack.c.bf16 %v339, %v339
      %341 = vrot.lane.b32.xlu0 %v158, 56
      %v342 = vpop.permute.xlu0 %341
      %v344 = vsel %vm161, %v340, 0
      %v347 = vsel %vm233, %v342, 0
      %349 = vmatprep.subr.bf16.mxu0 0
      %350 = vmatpush1.bf16.msra.mxu0 %v347
      %351 = vmatprep.subr.bf16.mxu0 0
      %352 = vmatpush1.bf16.msra.mxu0 0
      %353 = vmatprep.subr.bf16.mxu0 0
      %354 = vmatpush1.bf16.msra.mxu0 0
      %355 = vmatprep.subr.bf16.mxu0 0
      %356 = vmatpush1.bf16.msra.mxu0 0
      %357 = vmatprep.subr.bf16.mxu0 0
      %358 = vmatpush1.bf16.msra.mxu0 0
      %359 = vmatprep.subr.bf16.mxu0 0
      %360 = vmatpush1.bf16.msra.mxu0 0
      %361 = vmatprep.subr.bf16.mxu0 0
      %362 = vmatpush1.bf16.msra.mxu0 0
      %363 = vmatprep.subr.bf16.mxu0 0
      %364 = vmatpush1.bf16.msra.mxu0 0
      %365 = vmatprep.subr.bf16.mxu0 0
      %366 = vmatpush1.bf16.msra.mxu0 0
      %367 = vmatprep.subr.bf16.mxu0 0
      %368 = vmatpush1.bf16.msra.mxu0 0
      %369 = vmatprep.subr.bf16.mxu0 0
      %370 = vmatpush1.bf16.msra.mxu0 0
      %371 = vmatprep.subr.bf16.mxu0 0
      %372 = vmatpush1.bf16.msra.mxu0 0
      %373 = vmatprep.subr.bf16.mxu0 0
      %374 = vmatpush1.bf16.msra.mxu0 0
      %375 = vmatprep.subr.bf16.mxu0 0
      %376 = vmatpush1.bf16.msra.mxu0 0
      %377 = vmatprep.subr.bf16.mxu0 0
      %378 = vmatpush1.bf16.msra.mxu0 0
      %379 = vmatprep.subr.bf16.mxu0 0
      %380 = vmatpush1.bf16.msra.mxu0 0
      %381 = vmatprep.mubr.bf16.mxu0 0
      %382 = vmatmul.mubr.bf16.gmra.mrb[0].mxu0 %v344
      %v383 = vpop.f32.mrb[0].mxu0
      %v384 = vadd.f32 0.0, %v383
      %v385 = vpop.f32.mrb[0].mxu0
      %v386 = vpop.f32.mrb[0].mxu0
      %v387 = vpop.f32.mrb[0].mxu0
      %388 = vdwg.mxu0
      %389 = vrot.lane.b32.xlu0 %v158, 112
      %v390 = vpop.permute.xlu0 %389
      %391 = vrot.lane.b32.xlu0 %v158, 80
      %v392 = vpop.permute.xlu0 %391
      %v394 = vsel %vm161, %v390, 0
      %v397 = vsel %vm161, %v392, 0
      %399 = vmatprep.subr.bf16.mxu0 0
      %400 = vmatpush1.bf16.xpose.msra.mxu0 %v397
      %401 = vmatprep.subr.bf16.mxu0 0
      %402 = vmatpush1.bf16.xpose.msra.mxu0 0
      %403 = vmatprep.subr.bf16.mxu0 0
      %404 = vmatpush1.bf16.xpose.msra.mxu0 0
      %405 = vmatprep.subr.bf16.mxu0 0
      %406 = vmatpush1.bf16.xpose.msra.mxu0 0
      %407 = vmatprep.subr.bf16.mxu0 0
      %408 = vmatpush1.bf16.xpose.msra.mxu0 0
      %409 = vmatprep.subr.bf16.mxu0 0
      %410 = vmatpush1.bf16.xpose.msra.mxu0 0
      %411 = vmatprep.subr.bf16.mxu0 0
      %412 = vmatpush1.bf16.xpose.msra.mxu0 0
      %413 = vmatprep.subr.bf16.mxu0 0
      %414 = vmatpush1.bf16.xpose.msra.mxu0 0
      %415 = vmatprep.subr.bf16.mxu0 0
      %416 = vmatpush1.bf16.xpose.msra.mxu0 0
      %417 = vmatprep.subr.bf16.mxu0 0
      %418 = vmatpush1.bf16.xpose.msra.mxu0 0
      %419 = vmatprep.subr.bf16.mxu0 0
      %420 = vmatpush1.bf16.xpose.msra.mxu0 0
      %421 = vmatprep.subr.bf16.mxu0 0
      %422 = vmatpush1.bf16.xpose.msra.mxu0 0
      %423 = vmatprep.subr.bf16.mxu0 0
      %424 = vmatpush1.bf16.xpose.msra.mxu0 0
      %425 = vmatprep.subr.bf16.mxu0 0
      %426 = vmatpush1.bf16.xpose.msra.mxu0 0
      %427 = vmatprep.subr.bf16.mxu0 0
      %428 = vmatpush1.bf16.xpose.msra.mxu0 0
      %429 = vmatprep.subr.bf16.mxu0 0
      %430 = vmatpush1.bf16.xpose.msra.mxu0 0
      %431 = vmatprep.mubr.bf16.mxu0 0
      %432 = vmatmul.mubr.bf16.gmra.mrb[0].mxu0 %v394
      %v433 = vpop.f32.mrb[0].mxu0
      %v434 = vadd.f32 0.0, %v433
      %v435 = vpop.f32.mrb[0].mxu0
      %v436 = vpop.f32.mrb[0].mxu0
      %v437 = vpop.f32.mrb[0].mxu0
      %438 = vdwg.mxu0
      %v439 = vmul.f32 %v434, 0.35355338
      %v440 = vadd.f32 %v439, %v213
      %v441 = vsel %vm161, %v440, -inf
      %442 = vmax.xlane.f32.xlu0 %v441
      %v443 = vpop.xlane.xlu0 %442
      %v444 = vsub.f32 %v440, %v443
      %v445 = vmul.f32 %v444, 1.442695
      %v446 = vpow.pop %v445
      %v447 = vsel %vm161, %v446, 0.0
      %448 = vadd.xlane.f32.xlu0 %v447
      %v449 = vpop.xlane.xlu0 %448
      %v450 = vrcp.pop %v449
      %v451 = vmul.f32 %v446, %v450
      %v452 = vpack.c.bf16 %v451, %v451
      %453 = vrot.lane.b32.xlu0 %v158, 48
      %v454 = vpop.permute.xlu0 %453
      %v456 = vsel %vm161, %v452, 0
      %v459 = vsel %vm233, %v454, 0
      %461 = vmatprep.subr.bf16.mxu0 0
      %462 = vmatpush1.bf16.msra.mxu0 %v459
      %463 = vmatprep.subr.bf16.mxu0 0
      %464 = vmatpush1.bf16.msra.mxu0 0
      %465 = vmatprep.subr.bf16.mxu0 0
      %466 = vmatpush1.bf16.msra.mxu0 0
      %467 = vmatprep.subr.bf16.mxu0 0
      %468 = vmatpush1.bf16.msra.mxu0 0
      %469 = vmatprep.subr.bf16.mxu0 0
      %470 = vmatpush1.bf16.msra.mxu0 0
      %471 = vmatprep.subr.bf16.mxu0 0
      %472 = vmatpush1.bf16.msra.mxu0 0
      %473 = vmatprep.subr.bf16.mxu0 0
      %474 = vmatpush1.bf16.msra.mxu0 0
      %475 = vmatprep.subr.bf16.mxu0 0
      %476 = vmatpush1.bf16.msra.mxu0 0
      %477 = vmatprep.subr.bf16.mxu0 0
      %478 = vmatpush1.bf16.msra.mxu0 0
      %479 = vmatprep.subr.bf16.mxu0 0
      %480 = vmatpush1.bf16.msra.mxu0 0
      %481 = vmatprep.subr.bf16.mxu0 0
      %482 = vmatpush1.bf16.msra.mxu0 0
      %483 = vmatprep.subr.bf16.mxu0 0
      %484 = vmatpush1.bf16.msra.mxu0 0
      %485 = vmatprep.subr.bf16.mxu0 0
      %486 = vmatpush1.bf16.msra.mxu0 0
      %487 = vmatprep.subr.bf16.mxu0 0
      %488 = vmatpush1.bf16.msra.mxu0 0
      %489 = vmatprep.subr.bf16.mxu0 0
      %490 = vmatpush1.bf16.msra.mxu0 0
      %491 = vmatprep.subr.bf16.mxu0 0
      %492 = vmatpush1.bf16.msra.mxu0 0
      %493 = vmatprep.mubr.bf16.mxu0 0
      %494 = vmatmul.mubr.bf16.gmra.mrb[0].mxu0 %v456
      %v495 = vpop.f32.mrb[0].mxu0
      %v496 = vadd.f32 0.0, %v495
      %v497 = vpop.f32.mrb[0].mxu0
      %v498 = vpop.f32.mrb[0].mxu0
      %v499 = vpop.f32.mrb[0].mxu0
      %500 = vdwg.mxu0
      %501 = vrot.lane.b32.xlu0 %v158, 104
      %v502 = vpop.permute.xlu0 %501
      %503 = vrot.lane.b32.xlu0 %v158, 72
      %v504 = vpop.permute.xlu0 %503
      %v506 = vsel %vm161, %v502, 0
      %v509 = vsel %vm161, %v504, 0
      %511 = vmatprep.subr.bf16.mxu0 0
      %512 = vmatpush1.bf16.xpose.msra.mxu0 %v509
      %513 = vmatprep.subr.bf16.mxu0 0
      %514 = vmatpush1.bf16.xpose.msra.mxu0 0
      %515 = vmatprep.subr.bf16.mxu0 0
      %516 = vmatpush1.bf16.xpose.msra.mxu0 0
      %517 = vmatprep.subr.bf16.mxu0 0
      %518 = vmatpush1.bf16.xpose.msra.mxu0 0
      %519 = vmatprep.subr.bf16.mxu0 0
      %520 = vmatpush1.bf16.xpose.msra.mxu0 0
      %521 = vmatprep.subr.bf16.mxu0 0
      %522 = vmatpush1.bf16.xpose.msra.mxu0 0
      %523 = vmatprep.subr.bf16.mxu0 0
      %524 = vmatpush1.bf16.xpose.msra.mxu0 0
      %525 = vmatprep.subr.bf16.mxu0 0
      %526 = vmatpush1.bf16.xpose.msra.mxu0 0
      %527 = vmatprep.subr.bf16.mxu0 0
      %528 = vmatpush1.bf16.xpose.msra.mxu0 0
      %529 = vmatprep.subr.bf16.mxu0 0
      %530 = vmatpush1.bf16.xpose.msra.mxu0 0
      %531 = vmatprep.subr.bf16.mxu0 0
      %532 = vmatpush1.bf16.xpose.msra.mxu0 0
      %533 = vmatprep.subr.bf16.mxu0 0
      %534 = vmatpush1.bf16.xpose.msra.mxu0 0
      %535 = vmatprep.subr.bf16.mxu0 0
      %536 = vmatpush1.bf16.xpose.msra.mxu0 0
      %537 = vmatprep.subr.bf16.mxu0 0
      %538 = vmatpush1.bf16.xpose.msra.mxu0 0
      %539 = vmatprep.subr.bf16.mxu0 0
      %540 = vmatpush1.bf16.xpose.msra.mxu0 0
      %541 = vmatprep.subr.bf16.mxu0 0
      %542 = vmatpush1.bf16.xpose.msra.mxu0 0
      %543 = vmatprep.mubr.bf16.mxu0 0
      %544 = vmatmul.mubr.bf16.gmra.mrb[0].mxu0 %v506
      %v545 = vpop.f32.mrb[0].mxu0
      %v546 = vadd.f32 0.0, %v545
      %v547 = vpop.f32.mrb[0].mxu0
      %v548 = vpop.f32.mrb[0].mxu0
      %v549 = vpop.f32.mrb[0].mxu0
      %550 = vdwg.mxu0
      %v551 = vmul.f32 %v546, 0.35355338
      %v552 = vadd.f32 %v551, %v213
      %v553 = vsel %vm161, %v552, -inf
      %554 = vmax.xlane.f32.xlu0 %v553
      %v555 = vpop.xlane.xlu0 %554
      %v556 = vsub.f32 %v552, %v555
      %v557 = vmul.f32 %v556, 1.442695
      %v558 = vpow.pop %v557
      %v559 = vsel %vm161, %v558, 0.0
      %560 = vadd.xlane.f32.xlu0 %v559
      %v561 = vpop.xlane.xlu0 %560
      %v562 = vrcp.pop %v561
      %v563 = vmul.f32 %v558, %v562
      %v564 = vpack.c.bf16 %v563, %v563
      %565 = vrot.lane.b32.xlu0 %v158, 40
      %v566 = vpop.permute.xlu0 %565
      %v568 = vsel %vm161, %v564, 0
      %v571 = vsel %vm233, %v566, 0
      %573 = vmatprep.subr.bf16.mxu0 0
      %574 = vmatpush1.bf16.msra.mxu0 %v571
      %575 = vmatprep.subr.bf16.mxu0 0
      %576 = vmatpush1.bf16.msra.mxu0 0
      %577 = vmatprep.subr.bf16.mxu0 0
      %578 = vmatpush1.bf16.msra.mxu0 0
      %579 = vmatprep.subr.bf16.mxu0 0
      %580 = vmatpush1.bf16.msra.mxu0 0
      %581 = vmatprep.subr.bf16.mxu0 0
      %582 = vmatpush1.bf16.msra.mxu0 0
      %583 = vmatprep.subr.bf16.mxu0 0
      %584 = vmatpush1.bf16.msra.mxu0 0
      %585 = vmatprep.subr.bf16.mxu0 0
      %586 = vmatpush1.bf16.msra.mxu0 0
      %587 = vmatprep.subr.bf16.mxu0 0
      %588 = vmatpush1.bf16.msra.mxu0 0
      %589 = vmatprep.subr.bf16.mxu0 0
      %590 = vmatpush1.bf16.msra.mxu0 0
      %591 = vmatprep.subr.bf16.mxu0 0
      %592 = vmatpush1.bf16.msra.mxu0 0
      %593 = vmatprep.subr.bf16.mxu0 0
      %594 = vmatpush1.bf16.msra.mxu0 0
      %595 = vmatprep.subr.bf16.mxu0 0
      %596 = vmatpush1.bf16.msra.mxu0 0
      %597 = vmatprep.subr.bf16.mxu0 0
      %598 = vmatpush1.bf16.msra.mxu0 0
      %599 = vmatprep.subr.bf16.mxu0 0
      %600 = vmatpush1.bf16.msra.mxu0 0
      %601 = vmatprep.subr.bf16.mxu0 0
      %602 = vmatpush1.bf16.msra.mxu0 0
      %603 = vmatprep.subr.bf16.mxu0 0
      %604 = vmatpush1.bf16.msra.mxu0 0
      %605 = vmatprep.mubr.bf16.mxu0 0
      %606 = vmatmul.mubr.bf16.gmra.mrb[0].mxu0 %v568
      %v607 = vpop.f32.mrb[0].mxu0
      %v608 = vadd.f32 0.0, %v607
      %v609 = vpop.f32.mrb[0].mxu0
      %v610 = vpop.f32.mrb[0].mxu0
      %v611 = vpop.f32.mrb[0].mxu0
      %612 = vdwg.mxu0
      %614 = vrot.lane.b32.xlu0 %v384, 8
      %v615 = vpop.permute.xlu0 %614
      %618 = vrot.lane.b32.xlu0 %v496, 16
      %v619 = vpop.permute.xlu0 %618
      %622 = vrot.lane.b32.xlu0 %v608, 24
      %v623 = vpop.permute.xlu0 %622
      %v625 = vsel %vm161, %v272, %v615
      %vm626 = vcmask 130048
      %v627 = vsel %vm626, %v625, %v619
      %vm628 = vcmask 195584
      %v629 = vsel %vm628, %v627, %v623
      %v630 = vpack.c.bf16 %v629, %v629
      %vm631 = vcmask 257024
      %632 = vst.msk [vmem:[%s152] sm:$0xf] %vm631, %v630
      %p633 = scmp.lt.s32.totalorder %s13, 1
      %s634 = scalar_select %p633, %s13, 1
      %s635 = smul.addr %s634, 4
      %s636 = scalar_lea.vmem %s2, %s635
      // Predicated region
      $region29: #{roberta_forward.18} parent=27 // pred_check
        %p637 = pneg %p83
      $region30: #{roberta_forward.18} parent=27 // pred_check_branch
        %639 = sbr.rel (%p637) target = $region32
      $region31: #{roberta_forward.18} parent=27 // pred_region
        _
      $region32: #{roberta_forward.18} parent=27 // pred_fallthru
        _
    $region28: #{roberta_forward.18} parent=5 // pred_fallthru
      _
    %p640 = scmp.le.s32.totalorder 2, %s8
    // Predicated region
    $region33: #{roberta_forward.18} parent=5 // pred_check
      %p641 = pneg %p640
    $region34: #{roberta_forward.18} parent=5 // pred_check_branch
      %643 = sbr.rel (%p641) target = $region36
    $region35: #{roberta_forward.18} parent=5 // pred_region
      %s644 = ssub.s32 %s8, 2
      // Predicated region
      $region37: #{roberta_forward.18} parent=35 // pred_check
        %p645 = pneg %p89
      $region38: #{roberta_forward.18} parent=35 // pred_check_branch
        %647 = sbr.rel (%p645) target = $region40
      $region39: #{roberta_forward.18} parent=35 // pred_region
        %p648 = scmp.lt.s32.totalorder %s14, 1
        %s649 = scalar_select %p648, %s14, 1
        %s650 = smul.addr %s649, 4
        %s651 = scalar_lea.vmem %s2, %s650
      $region40: #{roberta_forward.18} parent=35 // pred_fallthru
        _
    $region36: #{roberta_forward.18} parent=5 // pred_fallthru
      _
  $region6: #{roberta_forward.18} parent=0 // loop_footer
    %s12 = sadd.s32 1, %s8
  $region7: #{roberta_forward.18} parent=0 // loop_footer_branch
    %7 = sbr.rel target = $region3
  $region8: #{roberta_forward.18} parent=0 // loop_exit
    _

// kernel: roberta_forward.20
$region0: #{roberta_forward.20}
  #allocation0 [shape = 'u32[]', space=smem, size = 0x4, offset = 0x4, fixed_abs, tag = 'smem constant byte address 0x4 - core index']
  #allocation1 [shape = 'u32[144,128]{1,0:T(1,128)}', space=vmem, size = 0x12000, scoped, tag = 'internal scratch']
  %s0 = inlined_call_operand.vmem [shape: f32[16,32], index: 0, kind: input, shape index: {}]
  %s1 = inlined_call_operand.vmem [shape: bf16[16,32], index: 1, kind: input, shape index: {}]
  %s2 = inlined_call_operand.vmem [shape: f32[1,32], index: 2, kind: input, shape index: {}]
  %s3 = inlined_call_operand.vmem [shape: f32[1,32], index: 3, kind: input, shape index: {}]
  %s4 = inlined_call_operand.vmem [shape: bf16[16,32], index: 4, kind: output, shape index: {}]
  %s5 = sld [smem:[#allocation0]]
  $region26: #{roberta_forward.20} parent=0
    _
  %s7 = ssub.s32 1, %s5
  %s8 = scalar_select 0, %s7, %s5
  // Predicated region
  $region2: #{roberta_forward.20} parent=0 // pred_check
    _
  $region3: #{roberta_forward.20} parent=0 // pred_check_branch
    %10 = sbr.rel (0) target = $region5
  $region4: #{roberta_forward.20} parent=0 // pred_region
    _
  $region5: #{roberta_forward.20} parent=0 // pred_fallthru
    _
  // Predicated region
  $region6: #{roberta_forward.20} parent=0 // pred_check
    _
  $region7: #{roberta_forward.20} parent=0 // pred_check_branch
    %12 = sbr.rel (0) target = $region9
  $region8: #{roberta_forward.20} parent=0 // pred_region
    _
  $region9: #{roberta_forward.20} parent=0 // pred_fallthru
    _
  // Predicated region
  $region10: #{roberta_forward.20} parent=0 // pred_check
    _
  $region11: #{roberta_forward.20} parent=0 // pred_check_branch
    %14 = sbr.rel (0) target = $region13
  $region12: #{roberta_forward.20} parent=0 // pred_region
    _
  $region13: #{roberta_forward.20} parent=0 // pred_fallthru
    _
  // Predicated region
  $region14: #{roberta_forward.20} parent=0 // pred_check
    _
  $region15: #{roberta_forward.20} parent=0 // pred_check_branch
    %16 = sbr.rel (0) target = $region17
  $region16: #{roberta_forward.20} parent=0 // pred_region
    _
  $region17: #{roberta_forward.20} parent=0 // pred_fallthru
    _
  %v17 = vld [vmem:[%s0] sm:$0xff]
  %v18 = vld [vmem:[%s0 + $0x8] sm:$0xff]
  %v19 = vld [vmem:[%s1] sm:$0xf]
  %v20 = vld [vmem:[%s1 + $0x4] sm:$0xf]
  %v21 = vunpack.c.l.bf16 %v19
  %v22 = vunpack.c.l.bf16 %v20
  %v23 = vadd.f32 %v17, %v21
  %v24 = vadd.f32 %v18, %v22
  %v25 = vld [vmem:[%s2] sm:$0x1]
  %v26 = vld [vmem:[%s3] sm:$0x1]
  %vm27 = vcmask 261120
  %v28 = vsel %vm27, %v23, 0.0
  %29 = vadd.xlane.f32.xlu0 %v28
  %v30 = vpop.xlane.xlu0 %29
  %v31 = vsel %vm27, %v24, 0.0
  %32 = vadd.xlane.f32.xlu0 %v31
  %v33 = vpop.xlane.xlu0 %32
  %v34 = vrcp.pop 32.0
  %v35 = vmul.f32 %v30, %v34
  %v36 = vmul.f32 %v33, %v34
  %v37 = vsub.f32 %v23, %v35
  %v38 = vsub.f32 %v24, %v36
  %v39 = vmul.f32 %v37, %v37
  %v40 = vmul.f32 %v38, %v38
  %v41 = vsel %vm27, %v39, 0.0
  %42 = vadd.xlane.f32.xlu0 %v41
  %v43 = vpop.xlane.xlu0 %42
  %v44 = vsel %vm27, %v40, 0.0
  %45 = vadd.xlane.f32.xlu0 %v44
  %v46 = vpop.xlane.xlu0 %45
  %v47 = vmul.f32 %v43, %v34
  %v48 = vmul.f32 %v46, %v34
  %v49 = vadd.f32 %v47, 1e-05
  %v50 = vadd.f32 %v48, 1e-05
  %v51 = vrsqrt.pop %v49
  %v52 = vrsqrt.pop %v50
  %v53 = vmul.f32 %v37, %v51
  %v54 = vmul.f32 %v38, %v52
  %v56 = vlaneseq
  %v57 = vshrl.u32 %v56, 7
  %v58 = vsub.s32 0, %v57
  %v59 = vrot.slane %v25, %v58
  %v61 = vmul.f32 %v53, %v59
  %v62 = vmul.f32 %v54, %v59
  %v64 = vlaneseq
  %v65 = vshrl.u32 %v64, 7
  %v66 = vsub.s32 0, %v65
  %v67 = vrot.slane %v26, %v66
  %v69 = vadd.f32 %v61, %v67
  %v70 = vadd.f32 %v62, %v67
  %v71 = vpack.c.bf16 %v70, %v69
  %v73 = vunpack.c.l.b16 %v71
  %v74 = vunpack.c.h.b16 %v71
  %v75 = vpack.c.b16 %v73, %v73
  %v76 = vpack.c.b16 %v74, %v74
  %vm79 = vcmask 257024
  %80 = vst.msk [vmem:[%s4] sm:$0xf] %vm79, %v75
  %81 = vst.msk [vmem:[%s4 + $0x4] sm:$0xf] %vm79, %v76
  // Predicated region
  $region18: #{roberta_forward.20} parent=0 // pred_check
    _
  $region19: #{roberta_forward.20} parent=0 // pred_check_branch
    %83 = sbr.rel (0) target = $region21
  $region20: #{roberta_forward.20} parent=0 // pred_region
    _
  $region21: #{roberta_forward.20} parent=0 // pred_fallthru
    _
  // Predicated region
  $region22: #{roberta_forward.20} parent=0 // pred_check
    _
  $region23: #{roberta_forward.20} parent=0 // pred_check_branch
    %85 = sbr.rel (0) target = $region25
  $region24: #{roberta_forward.20} parent=0 // pred_region
    _
  $region25: #{roberta_forward.20} parent=0 // pred_fallthru
    _

// kernel: roberta_forward.21
$region0: #{roberta_forward.21}
  #allocation0 [shape = 'u32[]', space=smem, size = 0x4, offset = 0x4, fixed_abs, tag = 'smem constant byte address 0x4 - core index']
  #allocation1 [shape = 'u32[144,128]{1,0:T(1,128)}', space=vmem, size = 0x12000, scoped, tag = 'internal scratch']
  #allocation2 [shape = 'f32[16,64]{1,0:T(8,128)}', space=vmem, size = 0x2000, scoped, tag = 'scratch operand']
  %s0 = inlined_call_operand.vmem [shape: bf16[16,32], index: 0, kind: input, shape index: {}]
  %s1 = inlined_call_operand.vmem [shape: bf16[32,64], index: 1, kind: input, shape index: {}]
  %s2 = inlined_call_operand.vmem [shape: f32[1,64], index: 2, kind: input, shape index: {}]
  %s3 = inlined_call_operand.vmem [shape: bf16[16,64], index: 3, kind: output, shape index: {}]
  %s4 = sld [smem:[#allocation0]]
  $region30: #{roberta_forward.21} parent=0
    _
  %s6 = ssub.s32 1, %s4
  %s7 = scalar_select 0, %s6, %s4
  // Predicated region
  $region2: #{roberta_forward.21} parent=0 // pred_check
    _
  $region3: #{roberta_forward.21} parent=0 // pred_check_branch
    %9 = sbr.rel (0) target = $region5
  $region4: #{roberta_forward.21} parent=0 // pred_region
    _
  $region5: #{roberta_forward.21} parent=0 // pred_fallthru
    _
  // Predicated region
  $region6: #{roberta_forward.21} parent=0 // pred_check
    _
  $region7: #{roberta_forward.21} parent=0 // pred_check_branch
    %11 = sbr.rel (0) target = $region9
  $region8: #{roberta_forward.21} parent=0 // pred_region
    _
  $region9: #{roberta_forward.21} parent=0 // pred_fallthru
    _
  // Predicated region
  $region10: #{roberta_forward.21} parent=0 // pred_check
    _
  $region11: #{roberta_forward.21} parent=0 // pred_check_branch
    %13 = sbr.rel (0) target = $region13
  $region12: #{roberta_forward.21} parent=0 // pred_region
    _
  $region13: #{roberta_forward.21} parent=0 // pred_fallthru
    _
  %p15 = scmp.eq.s32.totalorder 0, 0
  // Predicated region
  $region14: #{roberta_forward.21} parent=0 // pred_check
    %p16 = pneg %p15
  $region15: #{roberta_forward.21} parent=0 // pred_check_branch
    %18 = sbr.rel (%p16) target = $region17
  $region16: #{roberta_forward.21} parent=0 // pred_region
    %vm19 = vcmask 523264
    %20 = vst.msk [vmem:[#allocation2] sm:$0xff] %vm19, 0.0
    %21 = vst.msk [vmem:[#allocation2 + $0x8] sm:$0xff] %vm19, 0.0
  $region17: #{roberta_forward.21} parent=0 // pred_fallthru
    _
  %v22 = vld [vmem:[#allocation2] sm:$0xff]
  %v23 = vld [vmem:[#allocation2 + $0x8] sm:$0xff]
  %v24 = vld [vmem:[%s0] sm:$0xf]
  %v25 = vld [vmem:[%s0 + $0x4] sm:$0xf]
  %v26 = vld [vmem:[%s1] sm:$0xf]
  %v27 = vld [vmem:[%s1 + $0x4] sm:$0xf]
  %v28 = vld [vmem:[%s1 + $0x8] sm:$0xf]
  %v29 = vld [vmem:[%s1 + $0xc] sm:$0xf]
  %v32 = vunpack.c.l.b16 %v24
  %v33 = vunpack.c.l.b16 %v25
  %v34 = vpack.c.b16 %v33, %v32
  %v39 = vunpack.c.l.b16 %v26
  %v40 = vunpack.c.l.b16 %v27
  %v41 = vunpack.c.l.b16 %v28
  %v42 = vunpack.c.l.b16 %v29
  %v43 = vpack.c.b16 %v40, %v39
  %v44 = vpack.c.b16 %v42, %v41
  %vm47 = vcmask 261120
  %v49 = vsel %vm47, %v34, 0
  %51 = vmatprep.subr.bf16.mxu0 0
  %52 = vmatpush1.bf16.msra.mxu0 %v43
  %53 = vmatprep.subr.bf16.mxu0 0
  %54 = vmatpush1.bf16.msra.mxu0 %v44
  %55 = vmatprep.subr.bf16.mxu0 0
  %56 = vmatpush1.bf16.msra.mxu0 0
  %57 = vmatprep.subr.bf16.mxu0 0
  %58 = vmatpush1.bf16.msra.mxu0 0
  %59 = vmatprep.subr.bf16.mxu0 0
  %60 = vmatpush1.bf16.msra.mxu0 0
  %61 = vmatprep.subr.bf16.mxu0 0
  %62 = vmatpush1.bf16.msra.mxu0 0
  %63 = vmatprep.subr.bf16.mxu0 0
  %64 = vmatpush1.bf16.msra.mxu0 0
  %65 = vmatprep.subr.bf16.mxu0 0
  %66 = vmatpush1.bf16.msra.mxu0 0
  %67 = vmatprep.subr.bf16.mxu0 0
  %68 = vmatpush1.bf16.msra.mxu0 0
  %69 = vmatprep.subr.bf16.mxu0 0
  %70 = vmatpush1.bf16.msra.mxu0 0
  %71 = vmatprep.subr.bf16.mxu0 0
  %72 = vmatpush1.bf16.msra.mxu0 0
  %73 = vmatprep.subr.bf16.mxu0 0
  %74 = vmatpush1.bf16.msra.mxu0 0
  %75 = vmatprep.subr.bf16.mxu0 0
  %76 = vmatpush1.bf16.msra.mxu0 0
  %77 = vmatprep.subr.bf16.mxu0 0
  %78 = vmatpush1.bf16.msra.mxu0 0
  %79 = vmatprep.subr.bf16.mxu0 0
  %80 = vmatpush1.bf16.msra.mxu0 0
  %81 = vmatprep.subr.bf16.mxu0 0
  %82 = vmatpush1.bf16.msra.mxu0 0
  %83 = vmatprep.mubr.bf16.mxu0 0
  %84 = vmatmul.mubr.bf16.gmra.mrb[0].mxu0 %v49
  %v85 = vpop.f32.mrb[0].mxu0
  %v86 = vadd.f32 0.0, %v85
  %v87 = vpop.f32.mrb[0].mxu0
  %v88 = vpop.f32.mrb[0].mxu0
  %v89 = vadd.f32 0.0, %v88
  %v90 = vpop.f32.mrb[0].mxu0
  %91 = vdwg.mxu0
  %v92 = vadd.f32 %v22, %v86
  %v93 = vadd.f32 %v23, %v89
  %vm94 = vcmask 523264
  %95 = vst.msk [vmem:[#allocation2] sm:$0xff] %vm94, %v92
  %96 = vst.msk [vmem:[#allocation2 + $0x8] sm:$0xff] %vm94, %v93
  // Predicated region
  $region18: #{roberta_forward.21} parent=0 // pred_check
    %p97 = pneg %p15
  $region19: #{roberta_forward.21} parent=0 // pred_check_branch
    %99 = sbr.rel (%p97) target = $region21
  $region20: #{roberta_forward.21} parent=0 // pred_region
    %v100 = vld [vmem:[#allocation2] sm:$0xff]
    %v101 = vld [vmem:[#allocation2 + $0x8] sm:$0xff]
    %v102 = vld [vmem:[%s2] sm:$0x1]
    %v104 = vlaneseq
    %v105 = vshrl.u32 %v104, 7
    %v106 = vsub.s32 0, %v105
    %v107 = vrot.slane %v102, %v106
    %v109 = vadd.f32 %v100, %v107
    %v110 = vadd.f32 %v101, %v107
    %v111 = vmul.f32 %v109, %v109
    %v112 = vmul.f32 %v110, %v110
    %v113 = vmul.f32 %v109, %v111
    %v114 = vmul.f32 %v110, %v112
    %v115 = vmul.f32 %v113, 0.044715
    %v116 = vmul.f32 %v114, 0.044715
    %v117 = vadd.f32 %v109, %v115
    %v118 = vadd.f32 %v110, %v116
    %v119 = vmul.f32 %v117, 0.7978846
    %v120 = vmul.f32 %v118, 0.7978846
    %v121 = vtanh.pop %v119
    %v122 = vtanh.pop %v120
    %v123 = vadd.f32 %v121, 1.0
    %v124 = vadd.f32 %v122, 1.0
    %v125 = vmul.f32 %v123, 0.5
    %v126 = vmul.f32 %v124, 0.5
    %v127 = vmul.f32 %v109, %v125
    %v128 = vmul.f32 %v110, %v126
    %v129 = vpack.c.bf16 %v128, %v127
    %v131 = vunpack.c.l.b16 %v129
    %v132 = vunpack.c.h.b16 %v129
    %v133 = vpack.c.b16 %v131, %v131
    %v134 = vpack.c.b16 %v132, %v132
    %vm137 = vcmask 519168
    %138 = vst.msk [vmem:[%s3] sm:$0xf] %vm137, %v133
    %139 = vst.msk [vmem:[%s3 + $0x4] sm:$0xf] %vm137, %v134
  $region21: #{roberta_forward.21} parent=0 // pred_fallthru
    _
  // Predicated region
  $region22: #{roberta_forward.21} parent=0 // pred_check
    _
  $region23: #{roberta_forward.21} parent=0 // pred_check_branch
    %141 = sbr.rel (0) target = $region25
  $region24: #{roberta_forward.21} parent=0 // pred_region
    _
  $region25: #{roberta_forward.21} parent=0 // pred_fallthru
    _
  // Predicated region
  $region26: #{roberta_forward.21} parent=0 // pred_check
    _
  $region27: #{roberta_forward.21} parent=0 // pred_check_branch
    %143 = sbr.rel (0) target = $region29
  $region28: #{roberta_forward.21} parent=0 // pred_region
    _
  $region29: #{roberta_forward.21} parent=0 // pred_fallthru
    _

// kernel: roberta_forward.22
$region0: #{roberta_forward.22}
  #allocation0 [shape = 'u32[]', space=smem, size = 0x4, offset = 0x4, fixed_abs, tag = 'smem constant byte address 0x4 - core index']
  #allocation1 [shape = 'u32[144,128]{1,0:T(1,128)}', space=vmem, size = 0x12000, scoped, tag = 'internal scratch']
  #allocation2 [shape = 'f32[16,32]{1,0:T(8,128)}', space=vmem, size = 0x2000, scoped, tag = 'scratch operand']
  %s0 = inlined_call_operand.vmem [shape: bf16[16,64], index: 0, kind: input, shape index: {}]
  %s1 = inlined_call_operand.vmem [shape: bf16[64,32], index: 1, kind: input, shape index: {}]
  %s2 = inlined_call_operand.vmem [shape: f32[1,32], index: 2, kind: input, shape index: {}]
  %s3 = inlined_call_operand.vmem [shape: f32[16,32], index: 3, kind: output, shape index: {}]
  %s4 = sld [smem:[#allocation0]]
  $region30: #{roberta_forward.22} parent=0
    _
  %s6 = ssub.s32 1, %s4
  %s7 = scalar_select 0, %s6, %s4
  // Predicated region
  $region2: #{roberta_forward.22} parent=0 // pred_check
    _
  $region3: #{roberta_forward.22} parent=0 // pred_check_branch
    %9 = sbr.rel (0) target = $region5
  $region4: #{roberta_forward.22} parent=0 // pred_region
    _
  $region5: #{roberta_forward.22} parent=0 // pred_fallthru
    _
  // Predicated region
  $region6: #{roberta_forward.22} parent=0 // pred_check
    _
  $region7: #{roberta_forward.22} parent=0 // pred_check_branch
    %11 = sbr.rel (0) target = $region9
  $region8: #{roberta_forward.22} parent=0 // pred_region
    _
  $region9: #{roberta_forward.22} parent=0 // pred_fallthru
    _
  // Predicated region
  $region10: #{roberta_forward.22} parent=0 // pred_check
    _
  $region11: #{roberta_forward.22} parent=0 // pred_check_branch
    %13 = sbr.rel (0) target = $region13
  $region12: #{roberta_forward.22} parent=0 // pred_region
    _
  $region13: #{roberta_forward.22} parent=0 // pred_fallthru
    _
  %p15 = scmp.eq.s32.totalorder 0, 0
  // Predicated region
  $region14: #{roberta_forward.22} parent=0 // pred_check
    %p16 = pneg %p15
  $region15: #{roberta_forward.22} parent=0 // pred_check_branch
    %18 = sbr.rel (%p16) target = $region17
  $region16: #{roberta_forward.22} parent=0 // pred_region
    %vm19 = vcmask 261120
    %20 = vst.msk [vmem:[#allocation2] sm:$0xff] %vm19, 0.0
    %21 = vst.msk [vmem:[#allocation2 + $0x8] sm:$0xff] %vm19, 0.0
  $region17: #{roberta_forward.22} parent=0 // pred_fallthru
    _
  %v22 = vld [vmem:[#allocation2] sm:$0xff]
  %v23 = vld [vmem:[#allocation2 + $0x8] sm:$0xff]
  %v24 = vld [vmem:[%s0] sm:$0xf]
  %v25 = vld [vmem:[%s0 + $0x4] sm:$0xf]
  %v26 = vld [vmem:[%s1] sm:$0xf]
  %v27 = vld [vmem:[%s1 + $0x4] sm:$0xf]
  %v28 = vld [vmem:[%s1 + $0x8] sm:$0xf]
  %v29 = vld [vmem:[%s1 + $0xc] sm:$0xf]
  %v30 = vld [vmem:[%s1 + $0x10] sm:$0xf]
  %v31 = vld [vmem:[%s1 + $0x14] sm:$0xf]
  %v32 = vld [vmem:[%s1 + $0x18] sm:$0xf]
  %v33 = vld [vmem:[%s1 + $0x1c] sm:$0xf]
  %v36 = vunpack.c.l.b16 %v24
  %v37 = vunpack.c.l.b16 %v25
  %v38 = vpack.c.b16 %v37, %v36
  %v47 = vunpack.c.l.b16 %v26
  %v48 = vunpack.c.l.b16 %v27
  %v49 = vunpack.c.l.b16 %v28
  %v50 = vunpack.c.l.b16 %v29
  %v51 = vunpack.c.l.b16 %v30
  %v52 = vunpack.c.l.b16 %v31
  %v53 = vunpack.c.l.b16 %v32
  %v54 = vunpack.c.l.b16 %v33
  %v55 = vpack.c.b16 %v48, %v47
  %v56 = vpack.c.b16 %v50, %v49
  %v57 = vpack.c.b16 %v52, %v51
  %v58 = vpack.c.b16 %v54, %v53
  %vm63 = vcmask 523264
  %v65 = vsel %vm63, %v38, 0
  %67 = vmatprep.subr.bf16.mxu0 0
  %68 = vmatpush1.bf16.msra.mxu0 %v55
  %69 = vmatprep.subr.bf16.mxu0 0
  %70 = vmatpush1.bf16.msra.mxu0 %v56
  %71 = vmatprep.subr.bf16.mxu0 0
  %72 = vmatpush1.bf16.msra.mxu0 %v57
  %73 = vmatprep.subr.bf16.mxu0 0
  %74 = vmatpush1.bf16.msra.mxu0 %v58
  %75 = vmatprep.subr.bf16.mxu0 0
  %76 = vmatpush1.bf16.msra.mxu0 0
  %77 = vmatprep.subr.bf16.mxu0 0
  %78 = vmatpush1.bf16.msra.mxu0 0
  %79 = vmatprep.subr.bf16.mxu0 0
  %80 = vmatpush1.bf16.msra.mxu0 0
  %81 = vmatprep.subr.bf16.mxu0 0
  %82 = vmatpush1.bf16.msra.mxu0 0
  %83 = vmatprep.subr.bf16.mxu0 0
  %84 = vmatpush1.bf16.msra.mxu0 0
  %85 = vmatprep.subr.bf16.mxu0 0
  %86 = vmatpush1.bf16.msra.mxu0 0
  %87 = vmatprep.subr.bf16.mxu0 0
  %88 = vmatpush1.bf16.msra.mxu0 0
  %89 = vmatprep.subr.bf16.mxu0 0
  %90 = vmatpush1.bf16.msra.mxu0 0
  %91 = vmatprep.subr.bf16.mxu0 0
  %92 = vmatpush1.bf16.msra.mxu0 0
  %93 = vmatprep.subr.bf16.mxu0 0
  %94 = vmatpush1.bf16.msra.mxu0 0
  %95 = vmatprep.subr.bf16.mxu0 0
  %96 = vmatpush1.bf16.msra.mxu0 0
  %97 = vmatprep.subr.bf16.mxu0 0
  %98 = vmatpush1.bf16.msra.mxu0 0
  %99 = vmatprep.mubr.bf16.mxu0 0
  %100 = vmatmul.mubr.bf16.gmra.mrb[0].mxu0 %v65
  %v101 = vpop.f32.mrb[0].mxu0
  %v102 = vadd.f32 0.0, %v101
  %v103 = vpop.f32.mrb[0].mxu0
  %v104 = vpop.f32.mrb[0].mxu0
  %v105 = vadd.f32 0.0, %v104
  %v106 = vpop.f32.mrb[0].mxu0
  %107 = vdwg.mxu0
  %v108 = vadd.f32 %v22, %v102
  %v109 = vadd.f32 %v23, %v105
  %vm110 = vcmask 261120
  %111 = vst.msk [vmem:[#allocation2] sm:$0xff] %vm110, %v108
  %112 = vst.msk [vmem:[#allocation2 + $0x8] sm:$0xff] %vm110, %v109
  // Predicated region
  $region18: #{roberta_forward.22} parent=0 // pred_check
    %p113 = pneg %p15
  $region19: #{roberta_forward.22} parent=0 // pred_check_branch
    %115 = sbr.rel (%p113) target = $region21
  $region20: #{roberta_forward.22} parent=0 // pred_region
    %v116 = vld [vmem:[#allocation2] sm:$0xff]
    %v117 = vld [vmem:[#allocation2 + $0x8] sm:$0xff]
    %v118 = vld [vmem:[%s2] sm:$0x1]
    %v120 = vlaneseq
    %v121 = vshrl.u32 %v120, 7
    %v122 = vsub.s32 0, %v121
    %v123 = vrot.slane %v118, %v122
    %v125 = vadd.f32 %v116, %v123
    %v126 = vadd.f32 %v117, %v123
    %127 = vst.msk [vmem:[%s3] sm:$0xff] %vm110, %v125
    %128 = vst.msk [vmem:[%s3 + $0x8] sm:$0xff] %vm110, %v126
  $region21: #{roberta_forward.22} parent=0 // pred_fallthru
    _
  // Predicated region
  $region22: #{roberta_forward.22} parent=0 // pred_check
    _
  $region23: #{roberta_forward.22} parent=0 // pred_check_branch
    %130 = sbr.rel (0) target = $region25
  $region24: #{roberta_forward.22} parent=0 // pred_region
    _
  $region25: #{roberta_forward.22} parent=0 // pred_fallthru
    _
  // Predicated region
  $region26: #{roberta_forward.22} parent=0 // pred_check
    _
  $region27: #{roberta_forward.22} parent=0 // pred_check_branch
    %132 = sbr.rel (0) target = $region29
  $region28: #{roberta_forward.22} parent=0 // pred_region
    _
  $region29: #{roberta_forward.22} parent=0 // pred_fallthru
    _

// kernel: roberta_forward.31
$region0: #{roberta_forward.31}
  #allocation0 [shape = 'u32[]', space=smem, size = 0x4, offset = 0x4, fixed_abs, tag = 'smem constant byte address 0x4 - core index']
  #allocation1 [shape = 'u32[144,128]{1,0:T(1,128)}', space=vmem, size = 0x12000, scoped, tag = 'internal scratch']
  #allocation2 [shape = 'f32[2,32]{1,0:T(2,128)}', space=vmem, size = 0x400, scoped, tag = 'scratch operand']
  %s0 = inlined_call_operand.vmem [shape: bf16[2,32], index: 0, kind: input, shape index: {}]
  %s1 = inlined_call_operand.vmem [shape: bf16[32,32], index: 1, kind: input, shape index: {}]
  %s2 = inlined_call_operand.vmem [shape: f32[1,32], index: 2, kind: input, shape index: {}]
  %s3 = inlined_call_operand.hbm [shape: f32[2,32], index: 3, kind: output, shape index: {}]
  %s4 = sld [smem:[#allocation0]]
  $region30: #{roberta_forward.31} parent=0
    _
  %s6 = ssub.s32 1, %s4
  %s7 = scalar_select 0, %s6, %s4
  $region1: #{roberta_forward.31} parent=0
    #allocation3 [shape = 'u8[1024]{0}', space=vmem, size = 0x400, scoped, tag = 'output window, operand 0, single buffered']
    #allocation4 [shape = 's32[1]{0}', space=sflag, size = 0x4, scoped, tag = 'scoped memory for roberta_forward.31']
    %8 = vsyncpa [#allocation4], 0
    // Predicated region
    $region2: #{roberta_forward.31} parent=1 // pred_check
      _
    $region3: #{roberta_forward.31} parent=1 // pred_check_branch
      %10 = sbr.rel (0) target = $region5
    $region4: #{roberta_forward.31} parent=1 // pred_region
      _
    $region5: #{roberta_forward.31} parent=1 // pred_fallthru
      _
    // Predicated region
    $region6: #{roberta_forward.31} parent=1 // pred_check
      _
    $region7: #{roberta_forward.31} parent=1 // pred_check_branch
      %12 = sbr.rel (0) target = $region9
    $region8: #{roberta_forward.31} parent=1 // pred_region
      _
    $region9: #{roberta_forward.31} parent=1 // pred_fallthru
      _
    // Predicated region
    $region10: #{roberta_forward.31} parent=1 // pred_check
      _
    $region11: #{roberta_forward.31} parent=1 // pred_check_branch
      %14 = sbr.rel (0) target = $region13
    $region12: #{roberta_forward.31} parent=1 // pred_region
      _
    $region13: #{roberta_forward.31} parent=1 // pred_fallthru
      _
    %p16 = scmp.eq.s32.totalorder 0, 0
    // Predicated region
    $region14: #{roberta_forward.31} parent=1 // pred_check
      %p17 = pneg %p16
    $region15: #{roberta_forward.31} parent=1 // pred_check_branch
      %19 = sbr.rel (%p17) target = $region17
    $region16: #{roberta_forward.31} parent=1 // pred_region
      %vm20 = vcmask 254976
      %21 = vst.msk [vmem:[#allocation2] sm:$0x3] %vm20, 0.0
    $region17: #{roberta_forward.31} parent=1 // pred_fallthru
      _
    %v22 = vld [vmem:[#allocation2] sm:$0x3]
    %v23 = vld [vmem:[%s0] sm:$0x1]
    %v24 = vld [vmem:[%s1] sm:$0xf]
    %v25 = vld [vmem:[%s1 + $0x4] sm:$0xf]
    %v26 = vld [vmem:[%s1 + $0x8] sm:$0xf]
    %v27 = vld [vmem:[%s1 + $0xc] sm:$0xf]
    %v32 = vunpack.c.l.b16 %v24
    %v33 = vunpack.c.l.b16 %v25
    %v34 = vunpack.c.l.b16 %v26
    %v35 = vunpack.c.l.b16 %v27
    %v36 = vpack.c.b16 %v33, %v32
    %v37 = vpack.c.b16 %v35, %v34
    %vm40 = vcmask 261120
    %v42 = vsel %vm40, %v23, 0
    %44 = vmatprep.subr.bf16.mxu0 0
    %45 = vmatpush1.bf16.msra.mxu0 %v36
    %46 = vmatprep.subr.bf16.mxu0 0
    %47 = vmatpush1.bf16.msra.mxu0 %v37
    %48 = vmatprep.subr.bf16.mxu0 0
    %49 = vmatpush1.bf16.msra.mxu0 0
    %50 = vmatprep.subr.bf16.mxu0 0
    %51 = vmatpush1.bf16.msra.mxu0 0
    %52 = vmatprep.subr.bf16.mxu0 0
    %53 = vmatpush1.bf16.msra.mxu0 0
    %54 = vmatprep.subr.bf16.mxu0 0
    %55 = vmatpush1.bf16.msra.mxu0 0
    %56 = vmatprep.subr.bf16.mxu0 0
    %57 = vmatpush1.bf16.msra.mxu0 0
    %58 = vmatprep.subr.bf16.mxu0 0
    %59 = vmatpush1.bf16.msra.mxu0 0
    %60 = vmatprep.subr.bf16.mxu0 0
    %61 = vmatpush1.bf16.msra.mxu0 0
    %62 = vmatprep.subr.bf16.mxu0 0
    %63 = vmatpush1.bf16.msra.mxu0 0
    %64 = vmatprep.subr.bf16.mxu0 0
    %65 = vmatpush1.bf16.msra.mxu0 0
    %66 = vmatprep.subr.bf16.mxu0 0
    %67 = vmatpush1.bf16.msra.mxu0 0
    %68 = vmatprep.subr.bf16.mxu0 0
    %69 = vmatpush1.bf16.msra.mxu0 0
    %70 = vmatprep.subr.bf16.mxu0 0
    %71 = vmatpush1.bf16.msra.mxu0 0
    %72 = vmatprep.subr.bf16.mxu0 0
    %73 = vmatpush1.bf16.msra.mxu0 0
    %74 = vmatprep.subr.bf16.mxu0 0
    %75 = vmatpush1.bf16.msra.mxu0 0
    %76 = vmatprep.mubr.bf16.mxu0 0
    %77 = vmatmul.mubr.bf16.gmra.mrb[0].mxu0 %v42
    %v78 = vpop.f32.mrb[0].mxu0
    %v79 = vadd.f32 0.0, %v78
    %v80 = vpop.f32.mrb[0].mxu0
    %v81 = vpop.f32.mrb[0].mxu0
    %v82 = vpop.f32.mrb[0].mxu0
    %83 = vdwg.mxu0
    %v84 = vadd.f32 %v22, %v79
    %vm85 = vcmask 254976
    %86 = vst.msk [vmem:[#allocation2] sm:$0x3] %vm85, %v84
    // Predicated region
    $region18: #{roberta_forward.31} parent=1 // pred_check
      %p87 = pneg %p16
    $region19: #{roberta_forward.31} parent=1 // pred_check_branch
      %89 = sbr.rel (%p87) target = $region21
    $region20: #{roberta_forward.31} parent=1 // pred_region
      %v90 = vld [vmem:[#allocation2] sm:$0x3]
      %v91 = vld [vmem:[%s2] sm:$0x1]
      %v93 = vlaneseq
      %v94 = vshrl.u32 %v93, 7
      %v95 = vsub.s32 0, %v94
      %v96 = vrot.slane %v91, %v95
      %v98 = vadd.f32 %v90, %v96
      %v99 = vtanh.pop %v98
      %100 = vst.msk [vmem:[#allocation3] sm:$0x3] %vm85, %v99
    $region21: #{roberta_forward.31} parent=1 // pred_fallthru
      _
    // Predicated region
    $region22: #{roberta_forward.31} parent=1 // pred_check
      _
    $region23: #{roberta_forward.31} parent=1 // pred_check_branch
      %102 = sbr.rel (0) target = $region25
    $region24: #{roberta_forward.31} parent=1 // pred_region
      %s104 = ssub.s32 32, 32
      %105 = vsyncadd [#allocation4], %s104
      %s107 = sshll.u32 [#allocation3], 4
      %s108 = int_to_ptr.vmem [resolvable:$true] %s107
      %110 = dma.vmem_to_hbm [thread:$0]  %s108, 32, %s3, [#allocation4]
    $region25: #{roberta_forward.31} parent=1 // pred_fallthru
      _
    // Predicated region
    $region26: #{roberta_forward.31} parent=1 // pred_check
      _
    $region27: #{roberta_forward.31} parent=1 // pred_check_branch
      %112 = sbr.rel (0) target = $region29
    $region28: #{roberta_forward.31} parent=1 // pred_region
      %113 = dma.done [#allocation4], 32
    $region29: #{roberta_forward.31} parent=1 // pred_fallthru
      _
    %114 = vsyncpa [#allocation4], 1

</llo_original>
